<compile_context>
chip_gen: v7x
topology: tpu7x:2x2x1
jax: 0.10.0
libtpu: 0.0.40
codegen_flags: <defaults>
</compile_context>

<pallas_src>
import functools
import numpy as np
import jax
import jax.numpy as jnp
from jax import lax
from jax.experimental import pallas as pl
from jax.experimental.pallas import tpu as pltpu

REPRESENT_INDEX = 1
LN_EPS = 1e-6


def _ln_rows(x, gamma, beta):
    mean = jnp.mean(x, axis=-1, keepdims=True)
    var = jnp.mean((x - mean) ** 2, axis=-1, keepdims=True)
    return (x - mean) * lax.rsqrt(var + LN_EPS) * gamma + beta


# ----------------------------- fused Pallas kernel ------------------------------

def fused_encoder_kernel(x_ref, bias_ref, lngb_ref, wqkv_ref, wo_ref,
                         w1_ref, b1_ref, w2_ref, vecs_ref, o_ref,
                         *, n_head, d_k, d_v):
    Bt, L, D = x_ref.shape
    hdk = n_head * d_k
    hdv = n_head * d_v
    n_layers = wqkv_ref.shape[0]

    # initial encoder LayerNorm (f32); rows flattened so every matmul runs over Bt*L rows
    x = _ln_rows(x_ref[...].astype(jnp.float32).reshape(Bt * L, D),
                 lngb_ref[0:1], lngb_ref[1:2])

    # layer/head-invariant additive key-pad bias (0 keep / -1e9 pad), broadcast exactly once.
    # Every query row has at least one unmasked key (REPRESENT token), so -1e9 masking is safe.
    bias = jnp.broadcast_to(bias_ref[...], (Bt, L, L))

    scale = jnp.float32(1.0 / (d_k ** 0.5))

    def layer_body(l, x):
        # ---- multi-head self-attention: one fused QKV matmul (bf16 operands, f32 accum) ----
        x_b = x.astype(jnp.bfloat16)
        qkv = jnp.dot(x_b, wqkv_ref[l], preferred_element_type=jnp.float32)
        qkv = qkv.reshape(Bt, L, 2 * hdk + hdv)
        wo_l = wo_ref[l]                                        # (n_head, d_v, D) bf16
        attn = None
        for h in range(n_head):      # static tiny head loop; 3-D einsums lower natively
            qh = (qkv[:, :, h * d_k:(h + 1) * d_k] * scale).astype(jnp.bfloat16)
            kh = qkv[:, :, hdk + h * d_k:hdk + (h + 1) * d_k].astype(jnp.bfloat16)
            vh = qkv[:, :, 2 * hdk + h * d_v:2 * hdk + (h + 1) * d_v].astype(jnp.bfloat16)
            s = jnp.einsum("bqd,bkd->bqk", qh, kh, preferred_element_type=jnp.float32)
            s = s + bias
            s = s - jnp.max(s, axis=-1, keepdims=True)
            p = jnp.exp(s)
            p = p * pl.reciprocal(jnp.sum(p, axis=-1, keepdims=True), approx=True)
            ctx = jnp.einsum("bqk,bkd->bqd", p.astype(jnp.bfloat16), vh,
                             preferred_element_type=jnp.float32)
            # accumulate per-head output projections instead of a lane-axis concat
            proj = jnp.dot(ctx.reshape(Bt * L, d_v).astype(jnp.bfloat16), wo_l[h],
                           preferred_element_type=jnp.float32)
            attn = proj if attn is None else attn + proj

        vecs = vecs_ref[l]                                      # (5, D) f32: [b2, g1, be1, g2, be2]
        x1 = _ln_rows(attn + x, vecs[1:2], vecs[2:3])           # post-LN, residual

        # ---- position-wise feed-forward (ReLU), post-LN, residual ----
        h1 = jnp.dot(x1.astype(jnp.bfloat16), w1_ref[l],
                     preferred_element_type=jnp.float32) + b1_ref[l]
        h1 = jnp.maximum(h1, 0.0)
        h2 = jnp.dot(h1.astype(jnp.bfloat16), w2_ref[l],
                     preferred_element_type=jnp.float32) + vecs[0:1]
        return _ln_rows(h2 + x1, vecs[3:4], vecs[4:5])

    x = lax.fori_loop(0, n_layers, layer_body, x, unroll=True)
    o_ref[...] = x.reshape(Bt, L, D).astype(o_ref.dtype)


# ----------------------------- wrapper ------------------------------

def _vmem_budget_bytes():
    # per-chip VMEM budget (v5e/v6e: 128 MiB, v7x: 64 MiB); fallback is safe everywhere
    try:
        cap = int(pltpu.get_tpu_info().vmem_capacity_bytes)
        return max(32 * 1024 * 1024, (cap * 3) // 4)
    except Exception:
        return 48 * 1024 * 1024


def _pick_batch_tile(B, L, D, d_inner, n_head, weight_bytes, budget):
    """Largest divisor of B whose working set fits the VMEM budget. On single-TC chips
    (v5e/v6e) bigger is strictly better: weights stay resident, fewer grid steps.
    TODO(synk): on v7x, prefer exactly two tiles (one per TensorCore, CORE_PARALLEL) once B is
    large enough that splitting pays for the extra activation DMA."""
    for bt in sorted((d for d in range(1, B + 1) if B % d == 0), reverse=True):
        act_io = 2 * 2 * bt * L * D * 4                                  # in+out, double-buffered
        temps = bt * L * (6 * D + 2 * d_inner + 3 * n_head * L) * 4      # rough f32 working set
        if 2 * weight_bytes + act_io + temps <= budget:
            return bt
    return 1


def run_fused_encoder(x, bias, params):
    B, L, D = x.shape
    n_head, d_k, d_v = params["n_head"], params["d_k"], params["d_v"]
    n_layers = params["n_layers"]
    hdk, hdv = n_head * d_k, n_head * d_v
    d_inner = params["w1"].shape[-1]

    weight_arrays = (params["ln_gb"], params["wqkv"], params["wo"], params["w1"],
                     params["b1"], params["w2"], params["vecs"])
    weight_bytes = sum(int(np.prod(w.shape)) * w.dtype.itemsize for w in weight_arrays)
    budget = _vmem_budget_bytes()
    bt = _pick_batch_tile(B, L, D, d_inner, n_head, weight_bytes, budget)

    kernel = functools.partial(fused_encoder_kernel, n_head=n_head, d_k=d_k, d_v=d_v)

    def full(shape):     # whole stacked weight, constant block index -> stays VMEM-resident
        return pl.BlockSpec(shape, lambda *_: (0,) * len(shape))

    return pl.pallas_call(
        kernel,
        out_shape=jax.ShapeDtypeStruct((B, L, D), x.dtype),
        grid=(B // bt,),
        in_specs=[
            pl.BlockSpec((bt, L, D), lambda b: (b, 0, 0)),          # activations (batch-tiled)
            pl.BlockSpec((bt, 1, L), lambda b: (b, 0, 0)),          # additive key-pad bias (f32)
            full((2, D)),                                           # initial LN gamma/beta (f32)
            full((n_layers, D, 2 * hdk + hdv)),                     # fused QKV weights (bf16)
            full((n_layers, n_head, d_v, D)),                       # head-major out-proj (bf16)
            full((n_layers, D, d_inner)),                           # FFN w1 (bf16)
            full((n_layers, 1, d_inner)),                           # FFN b1 (f32)
            full((n_layers, d_inner, D)),                           # FFN w2 (bf16)
            full((n_layers, 5, D)),                                 # [b2, g1, be1, g2, be2] (f32)
        ],
        out_specs=pl.BlockSpec((bt, L, D), lambda b: (b, 0, 0)),
        compiler_params=pltpu.CompilerParams(
            dimension_semantics=("parallel",),
            vmem_limit_bytes=budget,
        ),
    )(x, bias, params["ln_gb"], params["wqkv"], params["wo"],
      params["w1"], params["b1"], params["w2"], params["vecs"])


# ----------------------------- parameter init ------------------------------

def sinusoid_pos_table(n_position, d_hid):
    pos = np.arange(n_position)[:, None].astype(np.float64)
    div = np.power(10000.0, 2 * (np.arange(d_hid) // 2) / d_hid)
    table = pos / div
    table[:, 0::2] = np.sin(table[:, 0::2])
    table[:, 1::2] = np.cos(table[:, 1::2])
    return jnp.asarray(table, jnp.float32)                      # (n_position, d_hid)


def init_params(key, n_src_vocab, d_word_vec, d_model, d_inner,
                n_head, d_k, d_v, n_layers, pad_idx, n_position):
    hdk, hdv = n_head * d_k, n_head * d_v
    keys = jax.random.split(key, 1 + 6 * n_layers)
    emb = jax.random.normal(keys[0], (n_src_vocab, d_word_vec), jnp.float32) * 0.05
    emb = emb.at[pad_idx].set(0.0)                              # padding_idx semantics

    wqkv, wo, w1, b1, w2, vecs = [], [], [], [], [], []
    ki = 1
    for _ in range(n_layers):
        wq = jax.random.normal(keys[ki + 0], (d_model, hdk), jnp.float32) * 0.05
        wk = jax.random.normal(keys[ki + 1], (d_model, hdk), jnp.float32) * 0.05
        wv = jax.random.normal(keys[ki + 2], (d_model, hdv), jnp.float32) * 0.05
        wqkv.append(jnp.concatenate([wq, wk, wv], axis=1))      # fused QKV weight
        wo.append((jax.random.normal(keys[ki + 3], (hdv, d_model), jnp.float32) * 0.05
                   ).reshape(n_head, d_v, d_model))             # head-major out projection
        w1.append(jax.random.normal(keys[ki + 4], (d_model, d_inner), jnp.float32) * 0.05)
        b1.append(jnp.zeros((1, d_inner), jnp.float32))
        w2.append(jax.random.normal(keys[ki + 5], (d_inner, d_model), jnp.float32) * 0.05)
        # small per-layer vectors, stacked as rows: [b2, g1, be1, g2, be2]
        vecs.append(jnp.stack([jnp.zeros((d_model,)), jnp.ones((d_model,)),
                               jnp.zeros((d_model,)), jnp.ones((d_model,)),
                               jnp.zeros((d_model,))], 0).astype(jnp.float32))
        ki += 6

    return {
        "emb": emb,
        "pos_table": sinusoid_pos_table(n_position, d_word_vec),
        "ln_gb": jnp.stack([jnp.ones((d_model,)), jnp.zeros((d_model,))], 0).astype(jnp.float32),
        # matmul weights in bf16: MXU-native on all generations, half the DMA bytes
        "wqkv": jnp.stack(wqkv).astype(jnp.bfloat16),
        "wo": jnp.stack(wo).astype(jnp.bfloat16),
        "w1": jnp.stack(w1).astype(jnp.bfloat16),
        "b1": jnp.stack(b1),
        "w2": jnp.stack(w2).astype(jnp.bfloat16),
        "vecs": jnp.stack(vecs),
        "n_head": n_head, "d_k": d_k, "d_v": d_v, "n_layers": n_layers,
    }


# ----------------------------- forward (glue + fused kernel) ------------------------------

def near_trans_encoder_forward(params, poi_type, loc_emb, near_pois_num_list, type_token_num):
    emb, pos_table = params["emb"], params["pos_table"]
    d_word_vec = emb.shape[1]
    P, S = poi_type.shape

    enc = emb[poi_type]                                         # (P, S, D) embedding lookup
    enc = enc + pos_table[None, :S, :]                          # positional encoding
    # dropout -> identity (eval mode)
    enc = enc + loc_emb[:, None, :]                             # loc_emb.unsqueeze(1)
    rep = emb[REPRESENT_INDEX][None, :]                         # (1, D)

    # host-side ragged re-batching (lengths are Python ints) -> glue, not kernel
    max_batch_len, c = 0, 0
    for n in near_pois_num_list:
        max_batch_len = max(max_batch_len, sum(type_token_num[c:c + n]))
        c += n
    max_batch_len += 1
    # pad the sequence axis to a sublane multiple (8); extra keys are masked so values at
    # positions < max_batch_len are identical to the unpadded computation.
    padded_len = -(-max_batch_len // 8) * 8
    # TODO(synk): for throughput-critical shapes pad further so bt*padded_len reaches the MXU
    # granule (128 rows on v5e / 256 on v6e/v7x); left at 8 here to avoid O(L^2) attention waste.

    rows, pad_num = [], []
    curr = t_i = 0
    for n in near_pois_num_list:
        parts = [rep]
        for j in range(n):
            parts.append(enc[curr + j, :type_token_num[t_i], :])
            t_i += 1
        seq = jnp.concatenate(parts, axis=0)
        pad_num.append(seq.shape[0])
        if seq.shape[0] < padded_len:
            seq = jnp.concatenate(
                [seq, jnp.zeros((padded_len - seq.shape[0], d_word_vec), seq.dtype)], 0)
        rows.append(seq)
        curr += n
    assert t_i == len(type_token_num)
    batched = jnp.stack(rows, 0)                                # (B, Lp, D)

    keep = jnp.arange(padded_len)[None, :] < jnp.asarray(pad_num, jnp.int32)[:, None]
    mask_pad = keep.astype(jnp.int32)[:, None, :]                           # (B, 1, Lp) int
    bias_pad = jnp.where(keep, 0.0, -1e9).astype(jnp.float32)[:, None, :]   # additive bias

    enc_out_pad = run_fused_encoder(batched, bias_pad, params)  # single fused pallas_call

    enc_out = enc_out_pad[:, :max_batch_len, :]
    final_mask = mask_pad[:, :, :max_batch_len]
    return enc_out, final_mask, batched, bias_pad


# ----------------------------- pure-JAX reference (mirrors kernel math) ------------------------------

def ref_layers(batched, bias, params):
    n_head, d_k, d_v = params["n_head"], params["d_k"], params["d_v"]
    hdk, hdv = n_head * d_k, n_head * d_v
    B, L, D = batched.shape
    x = _ln_rows(batched, params["ln_gb"][0], params["ln_gb"][1]).reshape(B * L, D)
    scale = jnp.float32(1.0 / (d_k ** 0.5))
    for l in range(params["n_layers"]):
        xb = x.astype(jnp.bfloat16)
        qkv = jnp.dot(xb, params["wqkv"][l], preferred_element_type=jnp.float32)
        qkv = qkv.reshape(B, L, 2 * hdk + hdv)
        attn = jnp.zeros((B * L, D), jnp.float32)
        for h in range(n_head):
            qh = (qkv[:, :, h * d_k:(h + 1) * d_k] * scale).astype(jnp.bfloat16)
            kh = qkv[:, :, hdk + h * d_k:hdk + (h + 1) * d_k].astype(jnp.bfloat16)
            vh = qkv[:, :, 2 * hdk + h * d_v:2 * hdk + (h + 1) * d_v].astype(jnp.bfloat16)
            s = jnp.einsum("bqd,bkd->bqk", qh, kh, preferred_element_type=jnp.float32) + bias
            p = jax.nn.softmax(s, axis=-1)
            ctx = jnp.einsum("bqk,bkd->bqd", p.astype(jnp.bfloat16), vh,
                             preferred_element_type=jnp.float32)
            attn = attn + jnp.dot(ctx.reshape(B * L, d_v).astype(jnp.bfloat16),
                                  params["wo"][l, h], preferred_element_type=jnp.float32)
        b2, g1, be1, g2, be2 = (params["vecs"][l, i] for i in range(5))
        x1 = _ln_rows(attn + x, g1, be1)
        h1 = jax.nn.relu(jnp.dot(x1.astype(jnp.bfloat16), params["w1"][l],
                                 preferred_element_type=jnp.float32) + params["b1"][l])
        h2 = jnp.dot(h1.astype(jnp.bfloat16), params["w2"][l],
                     preferred_element_type=jnp.float32) + b2
        x = _ln_rows(h2 + x1, g2, be2)
    return x.reshape(B, L, D)


# ----------------------------- main ------------------------------

if __name__ == "__main__":
    # small, forward-consistent shapes
    n_src_vocab, d_word_vec, d_model, d_inner = 16, 32, 32, 64
    n_layers, n_head, d_k, d_v, pad_idx, n_position = 2, 2, 16, 16, 0, 200
    # TODO(synk): d_model=32 limits every vreg/DMA to 25% lane density; padding d_model to 128
    # is a model-level change (weights/LN statistics) and is intentionally not done here.

    key = jax.random.PRNGKey(0)
    kp, k1, k2 = jax.random.split(key, 3)
    params = init_params(kp, n_src_vocab, d_word_vec, d_model, d_inner,
                         n_head, d_k, d_v, n_layers, pad_idx, n_position)

    near_pois_num_list = [2, 3]          # 2 groups -> batch B = 2
    type_token_num = [3, 2, 4, 1, 2]     # one entry per POI (5 POIs total)
    num_pois, seq_len = sum(near_pois_num_list), 4

    poi_type = jax.random.randint(k1, (num_pois, seq_len), 1, n_src_vocab, dtype=jnp.int32)
    loc_emb = jax.random.normal(k2, (num_pois, d_word_vec), jnp.float32) * 0.1

    enc_out, final_mask, batched_pad, bias_pad = near_trans_encoder_forward(
        params, poi_type, loc_emb, near_pois_num_list, type_token_num)
    enc_out = jax.block_until_ready(enc_out)
    final_mask = jax.block_until_ready(final_mask)

    # sanity-check the fused Pallas path against a pure-JAX reference (same bf16 cast points)
    ref = ref_layers(batched_pad, bias_pad, params)[:, :enc_out.shape[1], :]
    assert enc_out.shape == ref.shape
    np.testing.assert_allclose(np.asarray(enc_out), np.asarray(ref), rtol=1e-2, atol=1e-2)

    print("KERNEL_OK")
</pallas_src>

<mosaic_0001>
module attributes {stable_mosaic.version = 11 : i64} {
  func.func @fused_encoder_kernel(%arg0: i32, %arg1: memref<2x8x32xf32, #tpu.memory_space<vmem>>, %arg2: memref<2x1x8xf32, #tpu.memory_space<vmem>>, %arg3: memref<2x32xf32, #tpu.memory_space<vmem>>, %arg4: memref<2x32x96xbf16, #tpu.memory_space<vmem>>, %arg5: memref<2x2x16x32xbf16, #tpu.memory_space<vmem>>, %arg6: memref<2x32x64xbf16, #tpu.memory_space<vmem>>, %arg7: memref<2x1x64xf32, #tpu.memory_space<vmem>>, %arg8: memref<2x64x32xbf16, #tpu.memory_space<vmem>>, %arg9: memref<2x5x32xf32, #tpu.memory_space<vmem>>, %arg10: memref<2x8x32xf32, #tpu.memory_space<vmem>>) attributes {dimension_semantics = [#tpu.dimension_semantics<parallel>], iteration_bounds = array<i64: 1>, scalar_prefetch = 0 : i64, scratch_operands = 0 : i64, tpu.core_type = #tpu.core_type<tc>, window_params = [{transform_indices = @transform_0, window_bounds = array<i64: 2, 8, 32>}, {transform_indices = @transform_1, window_bounds = array<i64: 2, 1, 8>}, {pipeline_mode = #tpu.pipeline_mode<synchronous>, transform_indices = @transform_2, window_bounds = array<i64: 2, 32>}, {pipeline_mode = #tpu.pipeline_mode<synchronous>, transform_indices = @transform_3, window_bounds = array<i64: 2, 32, 96>}, {pipeline_mode = #tpu.pipeline_mode<synchronous>, transform_indices = @transform_4, window_bounds = array<i64: 2, 2, 16, 32>}, {pipeline_mode = #tpu.pipeline_mode<synchronous>, transform_indices = @transform_5, window_bounds = array<i64: 2, 32, 64>}, {pipeline_mode = #tpu.pipeline_mode<synchronous>, transform_indices = @transform_6, window_bounds = array<i64: 2, 1, 64>}, {pipeline_mode = #tpu.pipeline_mode<synchronous>, transform_indices = @transform_7, window_bounds = array<i64: 2, 64, 32>}, {pipeline_mode = #tpu.pipeline_mode<synchronous>, transform_indices = @transform_8, window_bounds = array<i64: 2, 5, 32>}, {transform_indices = @transform_9, window_bounds = array<i64: 2, 8, 32>}]} {
    %c0 = arith.constant 0 : index
    %c0_0 = arith.constant 0 : index
    %c0_1 = arith.constant 0 : index
    %0 = vector.load %arg1[%c0, %c0_0, %c0_1] : memref<2x8x32xf32, #tpu.memory_space<vmem>>, vector<2x8x32xf32>
    %1 = vector.shape_cast %0 : vector<2x8x32xf32> to vector<16x32xf32>
    %c0_2 = arith.constant 0 : index
    %c0_3 = arith.constant 0 : index
    %2 = vector.load %arg3[%c0_2, %c0_3] : memref<2x32xf32, #tpu.memory_space<vmem>>, vector<1x32xf32>
    %c1 = arith.constant 1 : index
    %c0_4 = arith.constant 0 : index
    %3 = vector.load %arg3[%c1, %c0_4] : memref<2x32xf32, #tpu.memory_space<vmem>>, vector<1x32xf32>
    %cst = arith.constant dense<0.000000e+00> : vector<16xf32>
    %4 = vector.multi_reduction <add>, %1, %cst [1] : vector<16x32xf32> to vector<16xf32>
    %5 = vector.shape_cast %4 : vector<16xf32> to vector<16x1xf32>
    %cst_5 = arith.constant 3.200000e+01 : f32
    %6 = vector.broadcast %cst_5 : f32 to vector<16x1xf32>
    %7 = arith.divf %5, %6 : vector<16x1xf32>
    %8 = vector.broadcast %7 : vector<16x1xf32> to vector<16x32xf32>
    %9 = arith.subf %1, %8 : vector<16x32xf32>
    %10 = arith.mulf %9, %9 : vector<16x32xf32>
    %cst_6 = arith.constant dense<0.000000e+00> : vector<16xf32>
    %11 = vector.multi_reduction <add>, %10, %cst_6 [1] : vector<16x32xf32> to vector<16xf32>
    %12 = vector.shape_cast %11 : vector<16xf32> to vector<16x1xf32>
    %cst_7 = arith.constant 3.200000e+01 : f32
    %13 = vector.broadcast %cst_7 : f32 to vector<16x1xf32>
    %14 = arith.divf %12, %13 : vector<16x1xf32>
    %15 = vector.broadcast %7 : vector<16x1xf32> to vector<16x32xf32>
    %16 = arith.subf %1, %15 : vector<16x32xf32>
    %cst_8 = arith.constant 9.99999997E-7 : f32
    %17 = vector.broadcast %cst_8 : f32 to vector<16x1xf32>
    %18 = arith.addf %14, %17 : vector<16x1xf32>
    %19 = math.rsqrt %18 : vector<16x1xf32>
    %20 = vector.broadcast %19 : vector<16x1xf32> to vector<16x32xf32>
    %21 = arith.mulf %16, %20 : vector<16x32xf32>
    %22 = vector.broadcast %2 : vector<1x32xf32> to vector<16x32xf32>
    %23 = arith.mulf %21, %22 : vector<16x32xf32>
    %24 = vector.broadcast %3 : vector<1x32xf32> to vector<16x32xf32>
    %25 = arith.addf %23, %24 : vector<16x32xf32>
    %c0_9 = arith.constant 0 : index
    %c0_10 = arith.constant 0 : index
    %c0_11 = arith.constant 0 : index
    %26 = vector.load %arg2[%c0_9, %c0_10, %c0_11] : memref<2x1x8xf32, #tpu.memory_space<vmem>>, vector<2x1x8xf32>
    %27 = vector.shape_cast %26 : vector<2x1x8xf32> to vector<2x1x8xf32>
    %28 = vector.broadcast %27 : vector<2x1x8xf32> to vector<2x8x8xf32>
    %cst_12 = arith.constant 2.500000e-01 : f32
    %c0_i32 = arith.constant 0 : i32
    %29 = arith.truncf %25 : vector<16x32xf32> to vector<16x32xbf16>
    %30 = arith.index_cast %c0_i32 : i32 to index
    %c0_13 = arith.constant 0 : index
    %c0_14 = arith.constant 0 : index
    %31 = vector.load %arg4[%30, %c0_13, %c0_14] : memref<2x32x96xbf16, #tpu.memory_space<vmem>>, vector<1x32x96xbf16>
    %32 = vector.shape_cast %31 : vector<1x32x96xbf16> to vector<32x96xbf16>
    %cst_15 = arith.constant dense<0.000000e+00> : vector<16x96xf32>
    %33 = tpu.matmul %29, %32, %cst_15 {dimension_numbers = #tpu.dot_dimension_numbers<[1], [0], [0], [1], [0, 0, 1, 1], [], []>} : vector<16x32xbf16>, vector<32x96xbf16>, vector<16x96xf32> -> vector<16x96xf32>
    %34 = vector.shape_cast %33 : vector<16x96xf32> to vector<2x8x96xf32>
    %35 = arith.index_cast %c0_i32 : i32 to index
    %c0_16 = arith.constant 0 : index
    %c0_17 = arith.constant 0 : index
    %c0_18 = arith.constant 0 : index
    %36 = vector.load %arg5[%35, %c0_16, %c0_17, %c0_18] : memref<2x2x16x32xbf16, #tpu.memory_space<vmem>>, vector<1x2x16x32xbf16>
    %37 = vector.shape_cast %36 : vector<1x2x16x32xbf16> to vector<2x16x32xbf16>
    %38 = vector.extract_strided_slice %34 {offsets = [0, 0, 0], sizes = [2, 8, 16], strides = [1, 1, 1]} : vector<2x8x96xf32> to vector<2x8x16xf32>
    %39 = vector.broadcast %cst_12 : f32 to vector<2x8x16xf32>
    %40 = arith.mulf %38, %39 : vector<2x8x16xf32>
    %41 = arith.truncf %40 : vector<2x8x16xf32> to vector<2x8x16xbf16>
    %42 = vector.extract_strided_slice %34 {offsets = [0, 0, 32], sizes = [2, 8, 16], strides = [1, 1, 1]} : vector<2x8x96xf32> to vector<2x8x16xf32>
    %43 = arith.truncf %42 : vector<2x8x16xf32> to vector<2x8x16xbf16>
    %44 = vector.extract_strided_slice %34 {offsets = [0, 0, 64], sizes = [2, 8, 16], strides = [1, 1, 1]} : vector<2x8x96xf32> to vector<2x8x16xf32>
    %45 = arith.truncf %44 : vector<2x8x16xf32> to vector<2x8x16xbf16>
    "tpu.trace_start"() <{level = 10 : i32, message = "bqd,bkd->bqk"}> : () -> ()
    %cst_19 = arith.constant dense<0.000000e+00> : vector<2x8x8xf32>
    %46 = tpu.matmul %41, %43, %cst_19 {dimension_numbers = #tpu.dot_dimension_numbers<[2], [2], [1], [1], [0, 0, 0, 1, 1, 1], [0], [0]>} : vector<2x8x16xbf16>, vector<2x8x16xbf16>, vector<2x8x8xf32> -> vector<2x8x8xf32>
    "tpu.trace_stop"() : () -> ()
    %47 = arith.addf %46, %28 : vector<2x8x8xf32>
    %cst_20 = arith.constant dense<0xFF800000> : vector<2x8xf32>
    %48 = vector.multi_reduction <maximumf>, %47, %cst_20 [2] : vector<2x8x8xf32> to vector<2x8xf32>
    %49 = vector.shape_cast %48 : vector<2x8xf32> to vector<2x8x1xf32>
    %50 = vector.broadcast %49 : vector<2x8x1xf32> to vector<2x8x8xf32>
    %51 = arith.subf %47, %50 : vector<2x8x8xf32>
    %52 = math.exp %51 : vector<2x8x8xf32>
    %cst_21 = arith.constant dense<0.000000e+00> : vector<2x8xf32>
    %53 = vector.multi_reduction <add>, %52, %cst_21 [2] : vector<2x8x8xf32> to vector<2x8xf32>
    %54 = vector.shape_cast %53 : vector<2x8xf32> to vector<2x8x1xf32>
    %55 = tpu.reciprocal %54 {approx = true} : vector<2x8x1xf32> -> vector<2x8x1xf32>
    %56 = vector.broadcast %55 : vector<2x8x1xf32> to vector<2x8x8xf32>
    %57 = arith.mulf %52, %56 : vector<2x8x8xf32>
    %58 = arith.truncf %57 : vector<2x8x8xf32> to vector<2x8x8xbf16>
    "tpu.trace_start"() <{level = 10 : i32, message = "bqk,bkd->bqd"}> : () -> ()
    %cst_22 = arith.constant dense<0.000000e+00> : vector<2x8x16xf32>
    %59 = tpu.matmul %58, %45, %cst_22 {dimension_numbers = #tpu.dot_dimension_numbers<[2], [1], [1], [2], [0, 0, 0, 1, 1, 2], [0], [0]>} : vector<2x8x8xbf16>, vector<2x8x16xbf16>, vector<2x8x16xf32> -> vector<2x8x16xf32>
    "tpu.trace_stop"() : () -> ()
    %60 = vector.shape_cast %59 : vector<2x8x16xf32> to vector<16x16xf32>
    %61 = arith.truncf %60 : vector<16x16xf32> to vector<16x16xbf16>
    %62 = vector.extract_strided_slice %37 {offsets = [0, 0, 0], sizes = [1, 16, 32], strides = [1, 1, 1]} : vector<2x16x32xbf16> to vector<1x16x32xbf16>
    %63 = vector.shape_cast %62 : vector<1x16x32xbf16> to vector<16x32xbf16>
    %cst_23 = arith.constant dense<0.000000e+00> : vector<16x32xf32>
    %64 = tpu.matmul %61, %63, %cst_23 {dimension_numbers = #tpu.dot_dimension_numbers<[1], [0], [0], [1], [0, 0, 1, 1], [], []>} : vector<16x16xbf16>, vector<16x32xbf16>, vector<16x32xf32> -> vector<16x32xf32>
    %65 = vector.extract_strided_slice %34 {offsets = [0, 0, 16], sizes = [2, 8, 16], strides = [1, 1, 1]} : vector<2x8x96xf32> to vector<2x8x16xf32>
    %66 = vector.broadcast %cst_12 : f32 to vector<2x8x16xf32>
    %67 = arith.mulf %65, %66 : vector<2x8x16xf32>
    %68 = arith.truncf %67 : vector<2x8x16xf32> to vector<2x8x16xbf16>
    %69 = vector.extract_strided_slice %34 {offsets = [0, 0, 48], sizes = [2, 8, 16], strides = [1, 1, 1]} : vector<2x8x96xf32> to vector<2x8x16xf32>
    %70 = arith.truncf %69 : vector<2x8x16xf32> to vector<2x8x16xbf16>
    %71 = vector.extract_strided_slice %34 {offsets = [0, 0, 80], sizes = [2, 8, 16], strides = [1, 1, 1]} : vector<2x8x96xf32> to vector<2x8x16xf32>
    %72 = arith.truncf %71 : vector<2x8x16xf32> to vector<2x8x16xbf16>
    "tpu.trace_start"() <{level = 10 : i32, message = "bqd,bkd->bqk"}> : () -> ()
    %cst_24 = arith.constant dense<0.000000e+00> : vector<2x8x8xf32>
    %73 = tpu.matmul %68, %70, %cst_24 {dimension_numbers = #tpu.dot_dimension_numbers<[2], [2], [1], [1], [0, 0, 0, 1, 1, 1], [0], [0]>} : vector<2x8x16xbf16>, vector<2x8x16xbf16>, vector<2x8x8xf32> -> vector<2x8x8xf32>
    "tpu.trace_stop"() : () -> ()
    %74 = arith.addf %73, %28 : vector<2x8x8xf32>
    %cst_25 = arith.constant dense<0xFF800000> : vector<2x8xf32>
    %75 = vector.multi_reduction <maximumf>, %74, %cst_25 [2] : vector<2x8x8xf32> to vector<2x8xf32>
    %76 = vector.shape_cast %75 : vector<2x8xf32> to vector<2x8x1xf32>
    %77 = vector.broadcast %76 : vector<2x8x1xf32> to vector<2x8x8xf32>
    %78 = arith.subf %74, %77 : vector<2x8x8xf32>
    %79 = math.exp %78 : vector<2x8x8xf32>
    %cst_26 = arith.constant dense<0.000000e+00> : vector<2x8xf32>
    %80 = vector.multi_reduction <add>, %79, %cst_26 [2] : vector<2x8x8xf32> to vector<2x8xf32>
    %81 = vector.shape_cast %80 : vector<2x8xf32> to vector<2x8x1xf32>
    %82 = tpu.reciprocal %81 {approx = true} : vector<2x8x1xf32> -> vector<2x8x1xf32>
    %83 = vector.broadcast %82 : vector<2x8x1xf32> to vector<2x8x8xf32>
    %84 = arith.mulf %79, %83 : vector<2x8x8xf32>
    %85 = arith.truncf %84 : vector<2x8x8xf32> to vector<2x8x8xbf16>
    "tpu.trace_start"() <{level = 10 : i32, message = "bqk,bkd->bqd"}> : () -> ()
    %cst_27 = arith.constant dense<0.000000e+00> : vector<2x8x16xf32>
    %86 = tpu.matmul %85, %72, %cst_27 {dimension_numbers = #tpu.dot_dimension_numbers<[2], [1], [1], [2], [0, 0, 0, 1, 1, 2], [0], [0]>} : vector<2x8x8xbf16>, vector<2x8x16xbf16>, vector<2x8x16xf32> -> vector<2x8x16xf32>
    "tpu.trace_stop"() : () -> ()
    %87 = vector.shape_cast %86 : vector<2x8x16xf32> to vector<16x16xf32>
    %88 = arith.truncf %87 : vector<16x16xf32> to vector<16x16xbf16>
    %89 = vector.extract_strided_slice %37 {offsets = [1, 0, 0], sizes = [1, 16, 32], strides = [1, 1, 1]} : vector<2x16x32xbf16> to vector<1x16x32xbf16>
    %90 = vector.shape_cast %89 : vector<1x16x32xbf16> to vector<16x32xbf16>
    %cst_28 = arith.constant dense<0.000000e+00> : vector<16x32xf32>
    %91 = tpu.matmul %88, %90, %cst_28 {dimension_numbers = #tpu.dot_dimension_numbers<[1], [0], [0], [1], [0, 0, 1, 1], [], []>} : vector<16x16xbf16>, vector<16x32xbf16>, vector<16x32xf32> -> vector<16x32xf32>
    %92 = arith.addf %64, %91 : vector<16x32xf32>
    %93 = arith.index_cast %c0_i32 : i32 to index
    %c0_29 = arith.constant 0 : index
    %c0_30 = arith.constant 0 : index
    %94 = vector.load %arg9[%93, %c0_29, %c0_30] : memref<2x5x32xf32, #tpu.memory_space<vmem>>, vector<1x5x32xf32>
    %95 = vector.shape_cast %94 : vector<1x5x32xf32> to vector<5x32xf32>
    %96 = arith.addf %92, %25 : vector<16x32xf32>
    %97 = vector.extract_strided_slice %95 {offsets = [1, 0], sizes = [1, 32], strides = [1, 1]} : vector<5x32xf32> to vector<1x32xf32>
    %98 = vector.extract_strided_slice %95 {offsets = [2, 0], sizes = [1, 32], strides = [1, 1]} : vector<5x32xf32> to vector<1x32xf32>
    %cst_31 = arith.constant dense<0.000000e+00> : vector<16xf32>
    %99 = vector.multi_reduction <add>, %96, %cst_31 [1] : vector<16x32xf32> to vector<16xf32>
    %100 = vector.shape_cast %99 : vector<16xf32> to vector<16x1xf32>
    %cst_32 = arith.constant 3.200000e+01 : f32
    %101 = vector.broadcast %cst_32 : f32 to vector<16x1xf32>
    %102 = arith.divf %100, %101 : vector<16x1xf32>
    %103 = vector.broadcast %102 : vector<16x1xf32> to vector<16x32xf32>
    %104 = arith.subf %96, %103 : vector<16x32xf32>
    %105 = arith.mulf %104, %104 : vector<16x32xf32>
    %cst_33 = arith.constant dense<0.000000e+00> : vector<16xf32>
    %106 = vector.multi_reduction <add>, %105, %cst_33 [1] : vector<16x32xf32> to vector<16xf32>
    %107 = vector.shape_cast %106 : vector<16xf32> to vector<16x1xf32>
    %cst_34 = arith.constant 3.200000e+01 : f32
    %108 = vector.broadcast %cst_34 : f32 to vector<16x1xf32>
    %109 = arith.divf %107, %108 : vector<16x1xf32>
    %110 = vector.broadcast %102 : vector<16x1xf32> to vector<16x32xf32>
    %111 = arith.subf %96, %110 : vector<16x32xf32>
    %cst_35 = arith.constant 9.99999997E-7 : f32
    %112 = vector.broadcast %cst_35 : f32 to vector<16x1xf32>
    %113 = arith.addf %109, %112 : vector<16x1xf32>
    %114 = math.rsqrt %113 : vector<16x1xf32>
    %115 = vector.broadcast %114 : vector<16x1xf32> to vector<16x32xf32>
    %116 = arith.mulf %111, %115 : vector<16x32xf32>
    %117 = vector.broadcast %97 : vector<1x32xf32> to vector<16x32xf32>
    %118 = arith.mulf %116, %117 : vector<16x32xf32>
    %119 = vector.broadcast %98 : vector<1x32xf32> to vector<16x32xf32>
    %120 = arith.addf %118, %119 : vector<16x32xf32>
    %121 = arith.truncf %120 : vector<16x32xf32> to vector<16x32xbf16>
    %122 = arith.index_cast %c0_i32 : i32 to index
    %c0_36 = arith.constant 0 : index
    %c0_37 = arith.constant 0 : index
    %123 = vector.load %arg6[%122, %c0_36, %c0_37] : memref<2x32x64xbf16, #tpu.memory_space<vmem>>, vector<1x32x64xbf16>
    %124 = vector.shape_cast %123 : vector<1x32x64xbf16> to vector<32x64xbf16>
    %cst_38 = arith.constant dense<0.000000e+00> : vector<16x64xf32>
    %125 = tpu.matmul %121, %124, %cst_38 {dimension_numbers = #tpu.dot_dimension_numbers<[1], [0], [0], [1], [0, 0, 1, 1], [], []>} : vector<16x32xbf16>, vector<32x64xbf16>, vector<16x64xf32> -> vector<16x64xf32>
    %126 = arith.index_cast %c0_i32 : i32 to index
    %c0_39 = arith.constant 0 : index
    %c0_40 = arith.constant 0 : index
    %127 = vector.load %arg7[%126, %c0_39, %c0_40] : memref<2x1x64xf32, #tpu.memory_space<vmem>>, vector<1x1x64xf32>
    %128 = vector.shape_cast %127 : vector<1x1x64xf32> to vector<1x64xf32>
    %129 = vector.broadcast %128 : vector<1x64xf32> to vector<16x64xf32>
    %130 = arith.addf %125, %129 : vector<16x64xf32>
    %cst_41 = arith.constant 0.000000e+00 : f32
    %131 = vector.broadcast %cst_41 : f32 to vector<16x64xf32>
    %132 = arith.maximumf %130, %131 : vector<16x64xf32>
    %133 = arith.truncf %132 : vector<16x64xf32> to vector<16x64xbf16>
    %134 = arith.index_cast %c0_i32 : i32 to index
    %c0_42 = arith.constant 0 : index
    %c0_43 = arith.constant 0 : index
    %135 = vector.load %arg8[%134, %c0_42, %c0_43] : memref<2x64x32xbf16, #tpu.memory_space<vmem>>, vector<1x64x32xbf16>
    %136 = vector.shape_cast %135 : vector<1x64x32xbf16> to vector<64x32xbf16>
    %cst_44 = arith.constant dense<0.000000e+00> : vector<16x32xf32>
    %137 = tpu.matmul %133, %136, %cst_44 {dimension_numbers = #tpu.dot_dimension_numbers<[1], [0], [0], [1], [0, 0, 1, 1], [], []>} : vector<16x64xbf16>, vector<64x32xbf16>, vector<16x32xf32> -> vector<16x32xf32>
    %138 = vector.extract_strided_slice %95 {offsets = [0, 0], sizes = [1, 32], strides = [1, 1]} : vector<5x32xf32> to vector<1x32xf32>
    %139 = vector.broadcast %138 : vector<1x32xf32> to vector<16x32xf32>
    %140 = arith.addf %137, %139 : vector<16x32xf32>
    %141 = arith.addf %140, %120 : vector<16x32xf32>
    %142 = vector.extract_strided_slice %95 {offsets = [3, 0], sizes = [1, 32], strides = [1, 1]} : vector<5x32xf32> to vector<1x32xf32>
    %143 = vector.extract_strided_slice %95 {offsets = [4, 0], sizes = [1, 32], strides = [1, 1]} : vector<5x32xf32> to vector<1x32xf32>
    %cst_45 = arith.constant dense<0.000000e+00> : vector<16xf32>
    %144 = vector.multi_reduction <add>, %141, %cst_45 [1] : vector<16x32xf32> to vector<16xf32>
    %145 = vector.shape_cast %144 : vector<16xf32> to vector<16x1xf32>
    %cst_46 = arith.constant 3.200000e+01 : f32
    %146 = vector.broadcast %cst_46 : f32 to vector<16x1xf32>
    %147 = arith.divf %145, %146 : vector<16x1xf32>
    %148 = vector.broadcast %147 : vector<16x1xf32> to vector<16x32xf32>
    %149 = arith.subf %141, %148 : vector<16x32xf32>
    %150 = arith.mulf %149, %149 : vector<16x32xf32>
    %cst_47 = arith.constant dense<0.000000e+00> : vector<16xf32>
    %151 = vector.multi_reduction <add>, %150, %cst_47 [1] : vector<16x32xf32> to vector<16xf32>
    %152 = vector.shape_cast %151 : vector<16xf32> to vector<16x1xf32>
    %cst_48 = arith.constant 3.200000e+01 : f32
    %153 = vector.broadcast %cst_48 : f32 to vector<16x1xf32>
    %154 = arith.divf %152, %153 : vector<16x1xf32>
    %155 = vector.broadcast %147 : vector<16x1xf32> to vector<16x32xf32>
    %156 = arith.subf %141, %155 : vector<16x32xf32>
    %cst_49 = arith.constant 9.99999997E-7 : f32
    %157 = vector.broadcast %cst_49 : f32 to vector<16x1xf32>
    %158 = arith.addf %154, %157 : vector<16x1xf32>
    %159 = math.rsqrt %158 : vector<16x1xf32>
    %160 = vector.broadcast %159 : vector<16x1xf32> to vector<16x32xf32>
    %161 = arith.mulf %156, %160 : vector<16x32xf32>
    %162 = vector.broadcast %142 : vector<1x32xf32> to vector<16x32xf32>
    %163 = arith.mulf %161, %162 : vector<16x32xf32>
    %164 = vector.broadcast %143 : vector<1x32xf32> to vector<16x32xf32>
    %165 = arith.addf %163, %164 : vector<16x32xf32>
    %c1_i32 = arith.constant 1 : i32
    %166 = arith.truncf %165 : vector<16x32xf32> to vector<16x32xbf16>
    %167 = arith.index_cast %c1_i32 : i32 to index
    %c0_50 = arith.constant 0 : index
    %c0_51 = arith.constant 0 : index
    %168 = vector.load %arg4[%167, %c0_50, %c0_51] : memref<2x32x96xbf16, #tpu.memory_space<vmem>>, vector<1x32x96xbf16>
    %169 = vector.shape_cast %168 : vector<1x32x96xbf16> to vector<32x96xbf16>
    %cst_52 = arith.constant dense<0.000000e+00> : vector<16x96xf32>
    %170 = tpu.matmul %166, %169, %cst_52 {dimension_numbers = #tpu.dot_dimension_numbers<[1], [0], [0], [1], [0, 0, 1, 1], [], []>} : vector<16x32xbf16>, vector<32x96xbf16>, vector<16x96xf32> -> vector<16x96xf32>
    %171 = vector.shape_cast %170 : vector<16x96xf32> to vector<2x8x96xf32>
    %172 = arith.index_cast %c1_i32 : i32 to index
    %c0_53 = arith.constant 0 : index
    %c0_54 = arith.constant 0 : index
    %c0_55 = arith.constant 0 : index
    %173 = vector.load %arg5[%172, %c0_53, %c0_54, %c0_55] : memref<2x2x16x32xbf16, #tpu.memory_space<vmem>>, vector<1x2x16x32xbf16>
    %174 = vector.shape_cast %173 : vector<1x2x16x32xbf16> to vector<2x16x32xbf16>
    %175 = vector.extract_strided_slice %171 {offsets = [0, 0, 0], sizes = [2, 8, 16], strides = [1, 1, 1]} : vector<2x8x96xf32> to vector<2x8x16xf32>
    %176 = vector.broadcast %cst_12 : f32 to vector<2x8x16xf32>
    %177 = arith.mulf %175, %176 : vector<2x8x16xf32>
    %178 = arith.truncf %177 : vector<2x8x16xf32> to vector<2x8x16xbf16>
    %179 = vector.extract_strided_slice %171 {offsets = [0, 0, 32], sizes = [2, 8, 16], strides = [1, 1, 1]} : vector<2x8x96xf32> to vector<2x8x16xf32>
    %180 = arith.truncf %179 : vector<2x8x16xf32> to vector<2x8x16xbf16>
    %181 = vector.extract_strided_slice %171 {offsets = [0, 0, 64], sizes = [2, 8, 16], strides = [1, 1, 1]} : vector<2x8x96xf32> to vector<2x8x16xf32>
    %182 = arith.truncf %181 : vector<2x8x16xf32> to vector<2x8x16xbf16>
    "tpu.trace_start"() <{level = 10 : i32, message = "bqd,bkd->bqk"}> : () -> ()
    %cst_56 = arith.constant dense<0.000000e+00> : vector<2x8x8xf32>
    %183 = tpu.matmul %178, %180, %cst_56 {dimension_numbers = #tpu.dot_dimension_numbers<[2], [2], [1], [1], [0, 0, 0, 1, 1, 1], [0], [0]>} : vector<2x8x16xbf16>, vector<2x8x16xbf16>, vector<2x8x8xf32> -> vector<2x8x8xf32>
    "tpu.trace_stop"() : () -> ()
    %184 = arith.addf %183, %28 : vector<2x8x8xf32>
    %cst_57 = arith.constant dense<0xFF800000> : vector<2x8xf32>
    %185 = vector.multi_reduction <maximumf>, %184, %cst_57 [2] : vector<2x8x8xf32> to vector<2x8xf32>
    %186 = vector.shape_cast %185 : vector<2x8xf32> to vector<2x8x1xf32>
    %187 = vector.broadcast %186 : vector<2x8x1xf32> to vector<2x8x8xf32>
    %188 = arith.subf %184, %187 : vector<2x8x8xf32>
    %189 = math.exp %188 : vector<2x8x8xf32>
    %cst_58 = arith.constant dense<0.000000e+00> : vector<2x8xf32>
    %190 = vector.multi_reduction <add>, %189, %cst_58 [2] : vector<2x8x8xf32> to vector<2x8xf32>
    %191 = vector.shape_cast %190 : vector<2x8xf32> to vector<2x8x1xf32>
    %192 = tpu.reciprocal %191 {approx = true} : vector<2x8x1xf32> -> vector<2x8x1xf32>
    %193 = vector.broadcast %192 : vector<2x8x1xf32> to vector<2x8x8xf32>
    %194 = arith.mulf %189, %193 : vector<2x8x8xf32>
    %195 = arith.truncf %194 : vector<2x8x8xf32> to vector<2x8x8xbf16>
    "tpu.trace_start"() <{level = 10 : i32, message = "bqk,bkd->bqd"}> : () -> ()
    %cst_59 = arith.constant dense<0.000000e+00> : vector<2x8x16xf32>
    %196 = tpu.matmul %195, %182, %cst_59 {dimension_numbers = #tpu.dot_dimension_numbers<[2], [1], [1], [2], [0, 0, 0, 1, 1, 2], [0], [0]>} : vector<2x8x8xbf16>, vector<2x8x16xbf16>, vector<2x8x16xf32> -> vector<2x8x16xf32>
    "tpu.trace_stop"() : () -> ()
    %197 = vector.shape_cast %196 : vector<2x8x16xf32> to vector<16x16xf32>
    %198 = arith.truncf %197 : vector<16x16xf32> to vector<16x16xbf16>
    %199 = vector.extract_strided_slice %174 {offsets = [0, 0, 0], sizes = [1, 16, 32], strides = [1, 1, 1]} : vector<2x16x32xbf16> to vector<1x16x32xbf16>
    %200 = vector.shape_cast %199 : vector<1x16x32xbf16> to vector<16x32xbf16>
    %cst_60 = arith.constant dense<0.000000e+00> : vector<16x32xf32>
    %201 = tpu.matmul %198, %200, %cst_60 {dimension_numbers = #tpu.dot_dimension_numbers<[1], [0], [0], [1], [0, 0, 1, 1], [], []>} : vector<16x16xbf16>, vector<16x32xbf16>, vector<16x32xf32> -> vector<16x32xf32>
    %202 = vector.extract_strided_slice %171 {offsets = [0, 0, 16], sizes = [2, 8, 16], strides = [1, 1, 1]} : vector<2x8x96xf32> to vector<2x8x16xf32>
    %203 = vector.broadcast %cst_12 : f32 to vector<2x8x16xf32>
    %204 = arith.mulf %202, %203 : vector<2x8x16xf32>
    %205 = arith.truncf %204 : vector<2x8x16xf32> to vector<2x8x16xbf16>
    %206 = vector.extract_strided_slice %171 {offsets = [0, 0, 48], sizes = [2, 8, 16], strides = [1, 1, 1]} : vector<2x8x96xf32> to vector<2x8x16xf32>
    %207 = arith.truncf %206 : vector<2x8x16xf32> to vector<2x8x16xbf16>
    %208 = vector.extract_strided_slice %171 {offsets = [0, 0, 80], sizes = [2, 8, 16], strides = [1, 1, 1]} : vector<2x8x96xf32> to vector<2x8x16xf32>
    %209 = arith.truncf %208 : vector<2x8x16xf32> to vector<2x8x16xbf16>
    "tpu.trace_start"() <{level = 10 : i32, message = "bqd,bkd->bqk"}> : () -> ()
    %cst_61 = arith.constant dense<0.000000e+00> : vector<2x8x8xf32>
    %210 = tpu.matmul %205, %207, %cst_61 {dimension_numbers = #tpu.dot_dimension_numbers<[2], [2], [1], [1], [0, 0, 0, 1, 1, 1], [0], [0]>} : vector<2x8x16xbf16>, vector<2x8x16xbf16>, vector<2x8x8xf32> -> vector<2x8x8xf32>
    "tpu.trace_stop"() : () -> ()
    %211 = arith.addf %210, %28 : vector<2x8x8xf32>
    %cst_62 = arith.constant dense<0xFF800000> : vector<2x8xf32>
    %212 = vector.multi_reduction <maximumf>, %211, %cst_62 [2] : vector<2x8x8xf32> to vector<2x8xf32>
    %213 = vector.shape_cast %212 : vector<2x8xf32> to vector<2x8x1xf32>
    %214 = vector.broadcast %213 : vector<2x8x1xf32> to vector<2x8x8xf32>
    %215 = arith.subf %211, %214 : vector<2x8x8xf32>
    %216 = math.exp %215 : vector<2x8x8xf32>
    %cst_63 = arith.constant dense<0.000000e+00> : vector<2x8xf32>
    %217 = vector.multi_reduction <add>, %216, %cst_63 [2] : vector<2x8x8xf32> to vector<2x8xf32>
    %218 = vector.shape_cast %217 : vector<2x8xf32> to vector<2x8x1xf32>
    %219 = tpu.reciprocal %218 {approx = true} : vector<2x8x1xf32> -> vector<2x8x1xf32>
    %220 = vector.broadcast %219 : vector<2x8x1xf32> to vector<2x8x8xf32>
    %221 = arith.mulf %216, %220 : vector<2x8x8xf32>
    %222 = arith.truncf %221 : vector<2x8x8xf32> to vector<2x8x8xbf16>
    "tpu.trace_start"() <{level = 10 : i32, message = "bqk,bkd->bqd"}> : () -> ()
    %cst_64 = arith.constant dense<0.000000e+00> : vector<2x8x16xf32>
    %223 = tpu.matmul %222, %209, %cst_64 {dimension_numbers = #tpu.dot_dimension_numbers<[2], [1], [1], [2], [0, 0, 0, 1, 1, 2], [0], [0]>} : vector<2x8x8xbf16>, vector<2x8x16xbf16>, vector<2x8x16xf32> -> vector<2x8x16xf32>
    "tpu.trace_stop"() : () -> ()
    %224 = vector.shape_cast %223 : vector<2x8x16xf32> to vector<16x16xf32>
    %225 = arith.truncf %224 : vector<16x16xf32> to vector<16x16xbf16>
    %226 = vector.extract_strided_slice %174 {offsets = [1, 0, 0], sizes = [1, 16, 32], strides = [1, 1, 1]} : vector<2x16x32xbf16> to vector<1x16x32xbf16>
    %227 = vector.shape_cast %226 : vector<1x16x32xbf16> to vector<16x32xbf16>
    %cst_65 = arith.constant dense<0.000000e+00> : vector<16x32xf32>
    %228 = tpu.matmul %225, %227, %cst_65 {dimension_numbers = #tpu.dot_dimension_numbers<[1], [0], [0], [1], [0, 0, 1, 1], [], []>} : vector<16x16xbf16>, vector<16x32xbf16>, vector<16x32xf32> -> vector<16x32xf32>
    %229 = arith.addf %201, %228 : vector<16x32xf32>
    %230 = arith.index_cast %c1_i32 : i32 to index
    %c0_66 = arith.constant 0 : index
    %c0_67 = arith.constant 0 : index
    %231 = vector.load %arg9[%230, %c0_66, %c0_67] : memref<2x5x32xf32, #tpu.memory_space<vmem>>, vector<1x5x32xf32>
    %232 = vector.shape_cast %231 : vector<1x5x32xf32> to vector<5x32xf32>
    %233 = arith.addf %229, %165 : vector<16x32xf32>
    %234 = vector.extract_strided_slice %232 {offsets = [1, 0], sizes = [1, 32], strides = [1, 1]} : vector<5x32xf32> to vector<1x32xf32>
    %235 = vector.extract_strided_slice %232 {offsets = [2, 0], sizes = [1, 32], strides = [1, 1]} : vector<5x32xf32> to vector<1x32xf32>
    %cst_68 = arith.constant dense<0.000000e+00> : vector<16xf32>
    %236 = vector.multi_reduction <add>, %233, %cst_68 [1] : vector<16x32xf32> to vector<16xf32>
    %237 = vector.shape_cast %236 : vector<16xf32> to vector<16x1xf32>
    %cst_69 = arith.constant 3.200000e+01 : f32
    %238 = vector.broadcast %cst_69 : f32 to vector<16x1xf32>
    %239 = arith.divf %237, %238 : vector<16x1xf32>
    %240 = vector.broadcast %239 : vector<16x1xf32> to vector<16x32xf32>
    %241 = arith.subf %233, %240 : vector<16x32xf32>
    %242 = arith.mulf %241, %241 : vector<16x32xf32>
    %cst_70 = arith.constant dense<0.000000e+00> : vector<16xf32>
    %243 = vector.multi_reduction <add>, %242, %cst_70 [1] : vector<16x32xf32> to vector<16xf32>
    %244 = vector.shape_cast %243 : vector<16xf32> to vector<16x1xf32>
    %cst_71 = arith.constant 3.200000e+01 : f32
    %245 = vector.broadcast %cst_71 : f32 to vector<16x1xf32>
    %246 = arith.divf %244, %245 : vector<16x1xf32>
    %247 = vector.broadcast %239 : vector<16x1xf32> to vector<16x32xf32>
    %248 = arith.subf %233, %247 : vector<16x32xf32>
    %cst_72 = arith.constant 9.99999997E-7 : f32
    %249 = vector.broadcast %cst_72 : f32 to vector<16x1xf32>
    %250 = arith.addf %246, %249 : vector<16x1xf32>
    %251 = math.rsqrt %250 : vector<16x1xf32>
    %252 = vector.broadcast %251 : vector<16x1xf32> to vector<16x32xf32>
    %253 = arith.mulf %248, %252 : vector<16x32xf32>
    %254 = vector.broadcast %234 : vector<1x32xf32> to vector<16x32xf32>
    %255 = arith.mulf %253, %254 : vector<16x32xf32>
    %256 = vector.broadcast %235 : vector<1x32xf32> to vector<16x32xf32>
    %257 = arith.addf %255, %256 : vector<16x32xf32>
    %258 = arith.truncf %257 : vector<16x32xf32> to vector<16x32xbf16>
    %259 = arith.index_cast %c1_i32 : i32 to index
    %c0_73 = arith.constant 0 : index
    %c0_74 = arith.constant 0 : index
    %260 = vector.load %arg6[%259, %c0_73, %c0_74] : memref<2x32x64xbf16, #tpu.memory_space<vmem>>, vector<1x32x64xbf16>
    %261 = vector.shape_cast %260 : vector<1x32x64xbf16> to vector<32x64xbf16>
    %cst_75 = arith.constant dense<0.000000e+00> : vector<16x64xf32>
    %262 = tpu.matmul %258, %261, %cst_75 {dimension_numbers = #tpu.dot_dimension_numbers<[1], [0], [0], [1], [0, 0, 1, 1], [], []>} : vector<16x32xbf16>, vector<32x64xbf16>, vector<16x64xf32> -> vector<16x64xf32>
    %263 = arith.index_cast %c1_i32 : i32 to index
    %c0_76 = arith.constant 0 : index
    %c0_77 = arith.constant 0 : index
    %264 = vector.load %arg7[%263, %c0_76, %c0_77] : memref<2x1x64xf32, #tpu.memory_space<vmem>>, vector<1x1x64xf32>
    %265 = vector.shape_cast %264 : vector<1x1x64xf32> to vector<1x64xf32>
    %266 = vector.broadcast %265 : vector<1x64xf32> to vector<16x64xf32>
    %267 = arith.addf %262, %266 : vector<16x64xf32>
    %cst_78 = arith.constant 0.000000e+00 : f32
    %268 = vector.broadcast %cst_78 : f32 to vector<16x64xf32>
    %269 = arith.maximumf %267, %268 : vector<16x64xf32>
    %270 = arith.truncf %269 : vector<16x64xf32> to vector<16x64xbf16>
    %271 = arith.index_cast %c1_i32 : i32 to index
    %c0_79 = arith.constant 0 : index
    %c0_80 = arith.constant 0 : index
    %272 = vector.load %arg8[%271, %c0_79, %c0_80] : memref<2x64x32xbf16, #tpu.memory_space<vmem>>, vector<1x64x32xbf16>
    %273 = vector.shape_cast %272 : vector<1x64x32xbf16> to vector<64x32xbf16>
    %cst_81 = arith.constant dense<0.000000e+00> : vector<16x32xf32>
    %274 = tpu.matmul %270, %273, %cst_81 {dimension_numbers = #tpu.dot_dimension_numbers<[1], [0], [0], [1], [0, 0, 1, 1], [], []>} : vector<16x64xbf16>, vector<64x32xbf16>, vector<16x32xf32> -> vector<16x32xf32>
    %275 = vector.extract_strided_slice %232 {offsets = [0, 0], sizes = [1, 32], strides = [1, 1]} : vector<5x32xf32> to vector<1x32xf32>
    %276 = vector.broadcast %275 : vector<1x32xf32> to vector<16x32xf32>
    %277 = arith.addf %274, %276 : vector<16x32xf32>
    %278 = arith.addf %277, %257 : vector<16x32xf32>
    %279 = vector.extract_strided_slice %232 {offsets = [3, 0], sizes = [1, 32], strides = [1, 1]} : vector<5x32xf32> to vector<1x32xf32>
    %280 = vector.extract_strided_slice %232 {offsets = [4, 0], sizes = [1, 32], strides = [1, 1]} : vector<5x32xf32> to vector<1x32xf32>
    %cst_82 = arith.constant dense<0.000000e+00> : vector<16xf32>
    %281 = vector.multi_reduction <add>, %278, %cst_82 [1] : vector<16x32xf32> to vector<16xf32>
    %282 = vector.shape_cast %281 : vector<16xf32> to vector<16x1xf32>
    %cst_83 = arith.constant 3.200000e+01 : f32
    %283 = vector.broadcast %cst_83 : f32 to vector<16x1xf32>
    %284 = arith.divf %282, %283 : vector<16x1xf32>
    %285 = vector.broadcast %284 : vector<16x1xf32> to vector<16x32xf32>
    %286 = arith.subf %278, %285 : vector<16x32xf32>
    %287 = arith.mulf %286, %286 : vector<16x32xf32>
    %cst_84 = arith.constant dense<0.000000e+00> : vector<16xf32>
    %288 = vector.multi_reduction <add>, %287, %cst_84 [1] : vector<16x32xf32> to vector<16xf32>
    %289 = vector.shape_cast %288 : vector<16xf32> to vector<16x1xf32>
    %cst_85 = arith.constant 3.200000e+01 : f32
    %290 = vector.broadcast %cst_85 : f32 to vector<16x1xf32>
    %291 = arith.divf %289, %290 : vector<16x1xf32>
    %292 = vector.broadcast %284 : vector<16x1xf32> to vector<16x32xf32>
    %293 = arith.subf %278, %292 : vector<16x32xf32>
    %cst_86 = arith.constant 9.99999997E-7 : f32
    %294 = vector.broadcast %cst_86 : f32 to vector<16x1xf32>
    %295 = arith.addf %291, %294 : vector<16x1xf32>
    %296 = math.rsqrt %295 : vector<16x1xf32>
    %297 = vector.broadcast %296 : vector<16x1xf32> to vector<16x32xf32>
    %298 = arith.mulf %293, %297 : vector<16x32xf32>
    %299 = vector.broadcast %279 : vector<1x32xf32> to vector<16x32xf32>
    %300 = arith.mulf %298, %299 : vector<16x32xf32>
    %301 = vector.broadcast %280 : vector<1x32xf32> to vector<16x32xf32>
    %302 = arith.addf %300, %301 : vector<16x32xf32>
    %c2_i32 = arith.constant 2 : i32
    %303 = vector.shape_cast %302 : vector<16x32xf32> to vector<2x8x32xf32>
    %c0_87 = arith.constant 0 : index
    %c0_88 = arith.constant 0 : index
    %c0_89 = arith.constant 0 : index
    %304 = vector.load %arg10[%c0_87, %c0_88, %c0_89] : memref<2x8x32xf32, #tpu.memory_space<vmem>>, vector<2x8x32xf32>
    tpu.vector_store %arg10[%c0_87, %c0_88, %c0_89], %303 {strides = array<i32>} : memref<2x8x32xf32, #tpu.memory_space<vmem>>, vector<2x8x32xf32>,
    return
  }
  func.func @transform_0(%arg0: i32) -> (i32, i32, i32) {
    %c0_i32 = arith.constant 0 : i32
    %c0_i32_0 = arith.constant 0 : i32
    %c0_i32_1 = arith.constant 0 : i32
    return %arg0, %c0_i32, %c0_i32_0 : i32, i32, i32
  }
  func.func @transform_1(%arg0: i32) -> (i32, i32, i32) {
    %c0_i32 = arith.constant 0 : i32
    %c0_i32_0 = arith.constant 0 : i32
    %c0_i32_1 = arith.constant 0 : i32
    return %arg0, %c0_i32, %c0_i32_0 : i32, i32, i32
  }
  func.func @transform_2(%arg0: i32) -> (i32, i32) {
    %c0_i32 = arith.constant 0 : i32
    %c0_i32_0 = arith.constant 0 : i32
    %c0_i32_1 = arith.constant 0 : i32
    return %c0_i32, %c0_i32_0 : i32, i32
  }
  func.func @transform_3(%arg0: i32) -> (i32, i32, i32) {
    %c0_i32 = arith.constant 0 : i32
    %c0_i32_0 = arith.constant 0 : i32
    %c0_i32_1 = arith.constant 0 : i32
    %c0_i32_2 = arith.constant 0 : i32
    return %c0_i32, %c0_i32_0, %c0_i32_1 : i32, i32, i32
  }
  func.func @transform_4(%arg0: i32) -> (i32, i32, i32, i32) {
    %c0_i32 = arith.constant 0 : i32
    %c0_i32_0 = arith.constant 0 : i32
    %c0_i32_1 = arith.constant 0 : i32
    %c0_i32_2 = arith.constant 0 : i32
    %c0_i32_3 = arith.constant 0 : i32
    return %c0_i32, %c0_i32_0, %c0_i32_1, %c0_i32_2 : i32, i32, i32, i32
  }
  func.func @transform_5(%arg0: i32) -> (i32, i32, i32) {
    %c0_i32 = arith.constant 0 : i32
    %c0_i32_0 = arith.constant 0 : i32
    %c0_i32_1 = arith.constant 0 : i32
    %c0_i32_2 = arith.constant 0 : i32
    return %c0_i32, %c0_i32_0, %c0_i32_1 : i32, i32, i32
  }
  func.func @transform_6(%arg0: i32) -> (i32, i32, i32) {
    %c0_i32 = arith.constant 0 : i32
    %c0_i32_0 = arith.constant 0 : i32
    %c0_i32_1 = arith.constant 0 : i32
    %c0_i32_2 = arith.constant 0 : i32
    return %c0_i32, %c0_i32_0, %c0_i32_1 : i32, i32, i32
  }
  func.func @transform_7(%arg0: i32) -> (i32, i32, i32) {
    %c0_i32 = arith.constant 0 : i32
    %c0_i32_0 = arith.constant 0 : i32
    %c0_i32_1 = arith.constant 0 : i32
    %c0_i32_2 = arith.constant 0 : i32
    return %c0_i32, %c0_i32_0, %c0_i32_1 : i32, i32, i32
  }
  func.func @transform_8(%arg0: i32) -> (i32, i32, i32) {
    %c0_i32 = arith.constant 0 : i32
    %c0_i32_0 = arith.constant 0 : i32
    %c0_i32_1 = arith.constant 0 : i32
    %c0_i32_2 = arith.constant 0 : i32
    return %c0_i32, %c0_i32_0, %c0_i32_1 : i32, i32, i32
  }
  func.func @transform_9(%arg0: i32) -> (i32, i32, i32) {
    %c0_i32 = arith.constant 0 : i32
    %c0_i32_0 = arith.constant 0 : i32
    %c0_i32_1 = arith.constant 0 : i32
    return %arg0, %c0_i32, %c0_i32_0 : i32, i32, i32
  }
}

</mosaic_0001>

<llo_original>
// kernel: tpu_custom_call.1
$region0: #{tpu_custom_call.1}
  #allocation0 [shape = 'u32[]', space=smem, size = 0x4, offset = 0x4, fixed_abs, tag = 'smem constant byte address 0x4 - core index']
  #allocation1 [shape = 'u32[144,128]{1,0:T(1,128)}', space=vmem, size = 0x12000, scoped, tag = 'internal scratch']
  %s0 = inlined_call_operand.vmem [shape: f32[2,8,32], index: 0, kind: input, shape index: {}]
  %s1 = inlined_call_operand.vmem [shape: f32[2,1,8], index: 1, kind: input, shape index: {}]
  %s2 = inlined_call_operand.vmem [shape: f32[2,32], index: 2, kind: input, shape index: {}]
  %s3 = inlined_call_operand.vmem [shape: bf16[2,32,96], index: 3, kind: input, shape index: {}]
  %s4 = inlined_call_operand.vmem [shape: bf16[2,2,16,32], index: 4, kind: input, shape index: {}]
  %s5 = inlined_call_operand.vmem [shape: bf16[2,32,64], index: 5, kind: input, shape index: {}]
  %s6 = inlined_call_operand.hbm [shape: f32[2,1,64], index: 6, kind: input, shape index: {}]
  %s7 = inlined_call_operand.vmem [shape: bf16[2,64,32], index: 7, kind: input, shape index: {}]
  %s8 = inlined_call_operand.vmem [shape: f32[2,5,32], index: 8, kind: input, shape index: {}]
  %s9 = inlined_call_operand.hbm [shape: f32[2,8,32], index: 9, kind: output, shape index: {}]
  %s10 = sld [smem:[#allocation0]]
  $region50: #{tpu_custom_call.1} parent=0
    _
  %s12 = ssub.s32 1, %s10
  %s13 = scalar_select 0, %s12, %s10
  $region1: #{tpu_custom_call.1} parent=0
    #allocation2 [shape = 'u8[1024]{0}', space=vmem, size = 0x400, scoped, tag = 'input window, operand 6, single buffered']
    #allocation3 [shape = 's32[1]{0}', space=sflag, size = 0x4, scoped, tag = 'scoped memory for tpu_custom_call.1']
    #allocation4 [shape = 's32[1]{0}', space=sflag, size = 0x4, scoped, tag = 'scoped memory for tpu_custom_call.1']
    #allocation5 [shape = 'u8[8192]{0}', space=vmem, size = 0x2000, scoped, tag = 'output window, operand 0, single buffered']
    %14 = vsyncpa [#allocation3], 0
    %15 = vsyncpa [#allocation4], 0
    // Predicated region
    $region2: #{tpu_custom_call.1} parent=1 // pred_check
      _
    $region3: #{tpu_custom_call.1} parent=1 // pred_check_branch
      %17 = sbr.rel (0) target = $region5
    $region4: #{tpu_custom_call.1} parent=1 // pred_region
      _
    $region5: #{tpu_custom_call.1} parent=1 // pred_fallthru
      _
    // Predicated region
    $region6: #{tpu_custom_call.1} parent=1 // pred_check
      _
    $region7: #{tpu_custom_call.1} parent=1 // pred_check_branch
      %19 = sbr.rel (0) target = $region9
    $region8: #{tpu_custom_call.1} parent=1 // pred_region
      _
    $region9: #{tpu_custom_call.1} parent=1 // pred_fallthru
      _
    // Predicated region
    $region10: #{tpu_custom_call.1} parent=1 // pred_check
      _
    $region11: #{tpu_custom_call.1} parent=1 // pred_check_branch
      %21 = sbr.rel (0) target = $region13
    $region12: #{tpu_custom_call.1} parent=1 // pred_region
      _
    $region13: #{tpu_custom_call.1} parent=1 // pred_fallthru
      _
    // Predicated region
    $region14: #{tpu_custom_call.1} parent=1 // pred_check
      _
    $region15: #{tpu_custom_call.1} parent=1 // pred_check_branch
      %23 = sbr.rel (0) target = $region17
    $region16: #{tpu_custom_call.1} parent=1 // pred_region
      _
    $region17: #{tpu_custom_call.1} parent=1 // pred_fallthru
      _
    // Predicated region
    $region18: #{tpu_custom_call.1} parent=1 // pred_check
      _
    $region19: #{tpu_custom_call.1} parent=1 // pred_check_branch
      %25 = sbr.rel (0) target = $region21
    $region20: #{tpu_custom_call.1} parent=1 // pred_region
      _
    $region21: #{tpu_custom_call.1} parent=1 // pred_fallthru
      _
    // Predicated region
    $region22: #{tpu_custom_call.1} parent=1 // pred_check
      _
    $region23: #{tpu_custom_call.1} parent=1 // pred_check_branch
      %27 = sbr.rel (0) target = $region25
    $region24: #{tpu_custom_call.1} parent=1 // pred_region
      _
    $region25: #{tpu_custom_call.1} parent=1 // pred_fallthru
      _
    // Predicated region
    $region26: #{tpu_custom_call.1} parent=1 // pred_check
      _
    $region27: #{tpu_custom_call.1} parent=1 // pred_check_branch
      %29 = sbr.rel (0) target = $region29
    $region28: #{tpu_custom_call.1} parent=1 // pred_region
      %s31 = ssub.s32 32, 32
      %32 = vsyncadd [#allocation3], %s31
      %s33 = sshll.u32 [#allocation2], 4
      %s34 = int_to_ptr.vmem [resolvable:$true] %s33
      %39 = dma.hbm_to_vmem [thread:$0]  %s6, 32, %s34, [#allocation3], 16, 16, 1
    $region29: #{tpu_custom_call.1} parent=1 // pred_fallthru
      _
    // Predicated region
    $region30: #{tpu_custom_call.1} parent=1 // pred_check
      _
    $region31: #{tpu_custom_call.1} parent=1 // pred_check_branch
      %41 = sbr.rel (0) target = $region33
    $region32: #{tpu_custom_call.1} parent=1 // pred_region
      _
    $region33: #{tpu_custom_call.1} parent=1 // pred_fallthru
      _
    // Predicated region
    $region34: #{tpu_custom_call.1} parent=1 // pred_check
      _
    $region35: #{tpu_custom_call.1} parent=1 // pred_check_branch
      %43 = sbr.rel (0) target = $region37
    $region36: #{tpu_custom_call.1} parent=1 // pred_region
      _
    $region37: #{tpu_custom_call.1} parent=1 // pred_fallthru
      _
    // Predicated region
    $region38: #{tpu_custom_call.1} parent=1 // pred_check
      _
    $region39: #{tpu_custom_call.1} parent=1 // pred_check_branch
      %45 = sbr.rel (0) target = $region41
    $region40: #{tpu_custom_call.1} parent=1 // pred_region
      %46 = dma.done [#allocation3], 32
    $region41: #{tpu_custom_call.1} parent=1 // pred_fallthru
      _
    %v48 = vld [vmem:[%s0] sm:$0xff]
    %v49 = vld [vmem:[%s0 + $0x8] sm:$0xff]
    %v50 = vld [vmem:[%s2] sm:$0x1]
    %v51 = vld [vmem:[%s2 + $0x1] sm:$0x1]
    %vm52 = vcmask 261120
    %v53 = vsel %vm52, %v48, 0.0
    %54 = vadd.xlane.f32.xlu0 %v53
    %v55 = vpop.xlane.xlu0 %54
    %v56 = vsel %vm52, %v49, 0.0
    %57 = vadd.xlane.f32.xlu0 %v56
    %v58 = vpop.xlane.xlu0 %57
    %v59 = vrcp.pop 32.0
    %v60 = vmul.f32 %v55, %v59
    %v61 = vmul.f32 %v58, %v59
    %v62 = vsub.f32 %v48, %v60
    %v63 = vsub.f32 %v49, %v61
    %v64 = vmul.f32 %v62, %v62
    %v65 = vmul.f32 %v63, %v63
    %v66 = vsel %vm52, %v64, 0.0
    %67 = vadd.xlane.f32.xlu0 %v66
    %v68 = vpop.xlane.xlu0 %67
    %v69 = vsel %vm52, %v65, 0.0
    %70 = vadd.xlane.f32.xlu0 %v69
    %v71 = vpop.xlane.xlu0 %70
    %v72 = vmul.f32 %v68, %v59
    %v73 = vmul.f32 %v71, %v59
    %v74 = vadd.f32 %v72, 1e-06
    %v75 = vadd.f32 %v73, 1e-06
    %v76 = vrsqrt.pop %v74
    %v77 = vrsqrt.pop %v75
    %v78 = vmul.f32 %v62, %v76
    %v79 = vmul.f32 %v63, %v77
    %v80 = vlaneseq
    %v81 = vshrl.u32 %v80, 7
    %v82 = vsub.s32 0, %v81
    %v83 = vrot.slane %v50, %v82
    %v84 = vmul.f32 %v78, %v83
    %v85 = vmul.f32 %v79, %v83
    %v86 = vlaneseq
    %v87 = vshrl.u32 %v86, 7
    %v88 = vsub.s32 0, %v87
    %v89 = vrot.slane %v51, %v88
    %v90 = vadd.f32 %v84, %v89
    %v91 = vadd.f32 %v85, %v89
    %v92 = vld [vmem:[%s1] sm:$0x1]
    %v93 = vld [vmem:[%s1 + $0x1] sm:$0x1]
    %v96 = vlaneseq
    %v97 = vshrl.u32 %v96, 7
    %v98 = vsub.s32 0, %v97
    %v99 = vrot.slane %v92, %v98
    %v100 = vlaneseq
    %v101 = vshrl.u32 %v100, 7
    %v102 = vsub.s32 0, %v101
    %v103 = vrot.slane %v93, %v102
    %v106 = vpack.c.bf16 %v91, %v90
    %v107 = vld [vmem:[%s3] sm:$0xf]
    %v108 = vld [vmem:[%s3 + $0x4] sm:$0xf]
    %v109 = vld [vmem:[%s3 + $0x8] sm:$0xf]
    %v110 = vld [vmem:[%s3 + $0xc] sm:$0xf]
    %v115 = vunpack.c.l.b16 %v107
    %v116 = vunpack.c.l.b16 %v108
    %v117 = vunpack.c.l.b16 %v109
    %v118 = vunpack.c.l.b16 %v110
    %v119 = vpack.c.b16 %v116, %v115
    %v120 = vpack.c.b16 %v118, %v117
    %v124 = vsel %vm52, %v106, 0
    %126 = vmatprep.subr.bf16.mxu0 0
    %127 = vmatpush1.bf16.msra.mxu0 %v119
    %128 = vmatprep.subr.bf16.mxu0 0
    %129 = vmatpush1.bf16.msra.mxu0 %v120
    %130 = vmatprep.subr.bf16.mxu0 0
    %131 = vmatpush1.bf16.msra.mxu0 0
    %132 = vmatprep.subr.bf16.mxu0 0
    %133 = vmatpush1.bf16.msra.mxu0 0
    %134 = vmatprep.subr.bf16.mxu0 0
    %135 = vmatpush1.bf16.msra.mxu0 0
    %136 = vmatprep.subr.bf16.mxu0 0
    %137 = vmatpush1.bf16.msra.mxu0 0
    %138 = vmatprep.subr.bf16.mxu0 0
    %139 = vmatpush1.bf16.msra.mxu0 0
    %140 = vmatprep.subr.bf16.mxu0 0
    %141 = vmatpush1.bf16.msra.mxu0 0
    %142 = vmatprep.subr.bf16.mxu0 0
    %143 = vmatpush1.bf16.msra.mxu0 0
    %144 = vmatprep.subr.bf16.mxu0 0
    %145 = vmatpush1.bf16.msra.mxu0 0
    %146 = vmatprep.subr.bf16.mxu0 0
    %147 = vmatpush1.bf16.msra.mxu0 0
    %148 = vmatprep.subr.bf16.mxu0 0
    %149 = vmatpush1.bf16.msra.mxu0 0
    %150 = vmatprep.subr.bf16.mxu0 0
    %151 = vmatpush1.bf16.msra.mxu0 0
    %152 = vmatprep.subr.bf16.mxu0 0
    %153 = vmatpush1.bf16.msra.mxu0 0
    %154 = vmatprep.subr.bf16.mxu0 0
    %155 = vmatpush1.bf16.msra.mxu0 0
    %156 = vmatprep.subr.bf16.mxu0 0
    %157 = vmatpush1.bf16.msra.mxu0 0
    %158 = vmatprep.mubr.bf16.mxu0 0
    %159 = vmatmul.mubr.bf16.gmra.mrb[0].mxu0 %v124
    %v160 = vpop.f32.mrb[0].mxu0
    %v161 = vadd.f32 0.0, %v160
    %v162 = vpop.f32.mrb[0].mxu0
    %v163 = vpop.f32.mrb[0].mxu0
    %v164 = vadd.f32 0.0, %v163
    %v165 = vpop.f32.mrb[0].mxu0
    %166 = vdwg.mxu0
    %v167 = vld [vmem:[%s4] sm:$0xf]
    %v168 = vld [vmem:[%s4 + $0x4] sm:$0xf]
    %v169 = vld [vmem:[%s4 + $0x8] sm:$0xf]
    %v170 = vld [vmem:[%s4 + $0xc] sm:$0xf]
    %v171 = vmul.f32 %v161, 0.25
    %v172 = vmul.f32 %v164, 0.25
    %v173 = vpack.c.bf16 %v171, %v171
    %v174 = vpack.c.bf16 %v172, %v172
    %v175 = vpack.c.bf16 %v161, %v161
    %v176 = vpack.c.bf16 %v164, %v164
    %178 = vrot.lane.b32.xlu0 %v175, 96
    %v179 = vpop.permute.xlu0 %178
    %vm180 = vcmask 130048
    %v182 = vsel %vm180, %v173, 0
    %v185 = vsel %vm180, %v179, 0
    %187 = vmatprep.subr.bf16.mxu0 0
    %188 = vmatpush1.bf16.xpose.msra.mxu0 %v185
    %189 = vmatprep.subr.bf16.mxu0 0
    %190 = vmatpush1.bf16.xpose.msra.mxu0 0
    %191 = vmatprep.subr.bf16.mxu0 0
    %192 = vmatpush1.bf16.xpose.msra.mxu0 0
    %193 = vmatprep.subr.bf16.mxu0 0
    %194 = vmatpush1.bf16.xpose.msra.mxu0 0
    %195 = vmatprep.subr.bf16.mxu0 0
    %196 = vmatpush1.bf16.xpose.msra.mxu0 0
    %197 = vmatprep.subr.bf16.mxu0 0
    %198 = vmatpush1.bf16.xpose.msra.mxu0 0
    %199 = vmatprep.subr.bf16.mxu0 0
    %200 = vmatpush1.bf16.xpose.msra.mxu0 0
    %201 = vmatprep.subr.bf16.mxu0 0
    %202 = vmatpush1.bf16.xpose.msra.mxu0 0
    %203 = vmatprep.subr.bf16.mxu0 0
    %204 = vmatpush1.bf16.xpose.msra.mxu0 0
    %205 = vmatprep.subr.bf16.mxu0 0
    %206 = vmatpush1.bf16.xpose.msra.mxu0 0
    %207 = vmatprep.subr.bf16.mxu0 0
    %208 = vmatpush1.bf16.xpose.msra.mxu0 0
    %209 = vmatprep.subr.bf16.mxu0 0
    %210 = vmatpush1.bf16.xpose.msra.mxu0 0
    %211 = vmatprep.subr.bf16.mxu0 0
    %212 = vmatpush1.bf16.xpose.msra.mxu0 0
    %213 = vmatprep.subr.bf16.mxu0 0
    %214 = vmatpush1.bf16.xpose.msra.mxu0 0
    %215 = vmatprep.subr.bf16.mxu0 0
    %216 = vmatpush1.bf16.xpose.msra.mxu0 0
    %217 = vmatprep.subr.bf16.mxu0 0
    %218 = vmatpush1.bf16.xpose.msra.mxu0 0
    %219 = vmatprep.mubr.bf16.mxu0 0
    %220 = vmatmul.mubr.bf16.gmra.mrb[0].mxu0 %v182
    %v221 = vpop.f32.mrb[0].mxu0
    %v222 = vadd.f32 %v99, %v221
    %v223 = vpop.f32.mrb[0].mxu0
    %v224 = vpop.f32.mrb[0].mxu0
    %v225 = vpop.f32.mrb[0].mxu0
    %226 = vdwg.mxu0
    %228 = vrot.lane.b32.xlu0 %v176, 96
    %v229 = vpop.permute.xlu0 %228
    %v231 = vsel %vm180, %v174, 0
    %v234 = vsel %vm180, %v229, 0
    %236 = vmatprep.subr.bf16.mxu0 0
    %237 = vmatpush1.bf16.xpose.msra.mxu0 %v234
    %238 = vmatprep.subr.bf16.mxu0 0
    %239 = vmatpush1.bf16.xpose.msra.mxu0 0
    %240 = vmatprep.subr.bf16.mxu0 0
    %241 = vmatpush1.bf16.xpose.msra.mxu0 0
    %242 = vmatprep.subr.bf16.mxu0 0
    %243 = vmatpush1.bf16.xpose.msra.mxu0 0
    %244 = vmatprep.subr.bf16.mxu0 0
    %245 = vmatpush1.bf16.xpose.msra.mxu0 0
    %246 = vmatprep.subr.bf16.mxu0 0
    %247 = vmatpush1.bf16.xpose.msra.mxu0 0
    %248 = vmatprep.subr.bf16.mxu0 0
    %249 = vmatpush1.bf16.xpose.msra.mxu0 0
    %250 = vmatprep.subr.bf16.mxu0 0
    %251 = vmatpush1.bf16.xpose.msra.mxu0 0
    %252 = vmatprep.subr.bf16.mxu0 0
    %253 = vmatpush1.bf16.xpose.msra.mxu0 0
    %254 = vmatprep.subr.bf16.mxu0 0
    %255 = vmatpush1.bf16.xpose.msra.mxu0 0
    %256 = vmatprep.subr.bf16.mxu0 0
    %257 = vmatpush1.bf16.xpose.msra.mxu0 0
    %258 = vmatprep.subr.bf16.mxu0 0
    %259 = vmatpush1.bf16.xpose.msra.mxu0 0
    %260 = vmatprep.subr.bf16.mxu0 0
    %261 = vmatpush1.bf16.xpose.msra.mxu0 0
    %262 = vmatprep.subr.bf16.mxu0 0
    %263 = vmatpush1.bf16.xpose.msra.mxu0 0
    %264 = vmatprep.subr.bf16.mxu0 0
    %265 = vmatpush1.bf16.xpose.msra.mxu0 0
    %266 = vmatprep.subr.bf16.mxu0 0
    %267 = vmatpush1.bf16.xpose.msra.mxu0 0
    %268 = vmatprep.mubr.bf16.mxu0 0
    %269 = vmatmul.mubr.bf16.gmra.mrb[0].mxu0 %v231
    %v270 = vpop.f32.mrb[0].mxu0
    %v271 = vadd.f32 %v103, %v270
    %v272 = vpop.f32.mrb[0].mxu0
    %v273 = vpop.f32.mrb[0].mxu0
    %v274 = vpop.f32.mrb[0].mxu0
    %275 = vdwg.mxu0
    %vm276 = vcmask 64512
    %v277 = vsel %vm276, %v222, -inf
    %278 = vmax.xlane.f32.xlu0 %v277
    %v279 = vpop.xlane.xlu0 %278
    %v280 = vsel %vm276, %v271, -inf
    %281 = vmax.xlane.f32.xlu0 %v280
    %v282 = vpop.xlane.xlu0 %281
    %v283 = vsub.f32 %v222, %v279
    %v284 = vsub.f32 %v271, %v282
    %v285 = vmul.f32 %v283, 1.442695
    %v286 = vpow.pop %v285
    %v287 = vmul.f32 %v284, 1.442695
    %v288 = vpow.pop %v287
    %v289 = vsel %vm276, %v286, 0.0
    %290 = vadd.xlane.f32.xlu0 %v289
    %v291 = vpop.xlane.xlu0 %290
    %v292 = vsel %vm276, %v288, 0.0
    %293 = vadd.xlane.f32.xlu0 %v292
    %v294 = vpop.xlane.xlu0 %293
    %v295 = vrcp.pop %v291
    %v296 = vrcp.pop %v294
    %v297 = vmul.f32 %v286, %v295
    %v298 = vmul.f32 %v288, %v296
    %v299 = vpack.c.bf16 %v297, %v297
    %v300 = vpack.c.bf16 %v298, %v298
    %301 = vrot.lane.b32.xlu0 %v175, 64
    %v302 = vpop.permute.xlu0 %301
    %v304 = vsel %vm276, %v299, 0
    %vm306 = vcmask 1043456
    %v308 = vsel %vm306, %v302, 0
    %310 = vmatprep.subr.bf16.mxu0 0
    %311 = vmatpush1.bf16.msra.mxu0 %v308
    %312 = vmatprep.subr.bf16.mxu0 0
    %313 = vmatpush1.bf16.msra.mxu0 0
    %314 = vmatprep.subr.bf16.mxu0 0
    %315 = vmatpush1.bf16.msra.mxu0 0
    %316 = vmatprep.subr.bf16.mxu0 0
    %317 = vmatpush1.bf16.msra.mxu0 0
    %318 = vmatprep.subr.bf16.mxu0 0
    %319 = vmatpush1.bf16.msra.mxu0 0
    %320 = vmatprep.subr.bf16.mxu0 0
    %321 = vmatpush1.bf16.msra.mxu0 0
    %322 = vmatprep.subr.bf16.mxu0 0
    %323 = vmatpush1.bf16.msra.mxu0 0
    %324 = vmatprep.subr.bf16.mxu0 0
    %325 = vmatpush1.bf16.msra.mxu0 0
    %326 = vmatprep.subr.bf16.mxu0 0
    %327 = vmatpush1.bf16.msra.mxu0 0
    %328 = vmatprep.subr.bf16.mxu0 0
    %329 = vmatpush1.bf16.msra.mxu0 0
    %330 = vmatprep.subr.bf16.mxu0 0
    %331 = vmatpush1.bf16.msra.mxu0 0
    %332 = vmatprep.subr.bf16.mxu0 0
    %333 = vmatpush1.bf16.msra.mxu0 0
    %334 = vmatprep.subr.bf16.mxu0 0
    %335 = vmatpush1.bf16.msra.mxu0 0
    %336 = vmatprep.subr.bf16.mxu0 0
    %337 = vmatpush1.bf16.msra.mxu0 0
    %338 = vmatprep.subr.bf16.mxu0 0
    %339 = vmatpush1.bf16.msra.mxu0 0
    %340 = vmatprep.subr.bf16.mxu0 0
    %341 = vmatpush1.bf16.msra.mxu0 0
    %342 = vmatprep.mubr.bf16.mxu0 0
    %343 = vmatmul.mubr.bf16.gmra.mrb[0].mxu0 %v304
    %v344 = vpop.f32.mrb[0].mxu0
    %v345 = vadd.f32 0.0, %v344
    %v346 = vpop.f32.mrb[0].mxu0
    %v347 = vpop.f32.mrb[0].mxu0
    %v348 = vpop.f32.mrb[0].mxu0
    %349 = vdwg.mxu0
    %350 = vrot.lane.b32.xlu0 %v176, 64
    %v351 = vpop.permute.xlu0 %350
    %v353 = vsel %vm276, %v300, 0
    %v356 = vsel %vm306, %v351, 0
    %358 = vmatprep.subr.bf16.mxu0 0
    %359 = vmatpush1.bf16.msra.mxu0 %v356
    %360 = vmatprep.subr.bf16.mxu0 0
    %361 = vmatpush1.bf16.msra.mxu0 0
    %362 = vmatprep.subr.bf16.mxu0 0
    %363 = vmatpush1.bf16.msra.mxu0 0
    %364 = vmatprep.subr.bf16.mxu0 0
    %365 = vmatpush1.bf16.msra.mxu0 0
    %366 = vmatprep.subr.bf16.mxu0 0
    %367 = vmatpush1.bf16.msra.mxu0 0
    %368 = vmatprep.subr.bf16.mxu0 0
    %369 = vmatpush1.bf16.msra.mxu0 0
    %370 = vmatprep.subr.bf16.mxu0 0
    %371 = vmatpush1.bf16.msra.mxu0 0
    %372 = vmatprep.subr.bf16.mxu0 0
    %373 = vmatpush1.bf16.msra.mxu0 0
    %374 = vmatprep.subr.bf16.mxu0 0
    %375 = vmatpush1.bf16.msra.mxu0 0
    %376 = vmatprep.subr.bf16.mxu0 0
    %377 = vmatpush1.bf16.msra.mxu0 0
    %378 = vmatprep.subr.bf16.mxu0 0
    %379 = vmatpush1.bf16.msra.mxu0 0
    %380 = vmatprep.subr.bf16.mxu0 0
    %381 = vmatpush1.bf16.msra.mxu0 0
    %382 = vmatprep.subr.bf16.mxu0 0
    %383 = vmatpush1.bf16.msra.mxu0 0
    %384 = vmatprep.subr.bf16.mxu0 0
    %385 = vmatpush1.bf16.msra.mxu0 0
    %386 = vmatprep.subr.bf16.mxu0 0
    %387 = vmatpush1.bf16.msra.mxu0 0
    %388 = vmatprep.subr.bf16.mxu0 0
    %389 = vmatpush1.bf16.msra.mxu0 0
    %390 = vmatprep.mubr.bf16.mxu0 0
    %391 = vmatmul.mubr.bf16.gmra.mrb[0].mxu0 %v353
    %v392 = vpop.f32.mrb[0].mxu0
    %v393 = vadd.f32 0.0, %v392
    %v394 = vpop.f32.mrb[0].mxu0
    %v395 = vpop.f32.mrb[0].mxu0
    %v396 = vpop.f32.mrb[0].mxu0
    %397 = vdwg.mxu0
    %v398 = vpack.c.bf16 %v393, %v345
    %400 = vrot.lane.b32.xlu0 %v173, 112
    %v401 = vpop.permute.xlu0 %400
    %402 = vrot.lane.b32.xlu0 %v175, 80
    %v403 = vpop.permute.xlu0 %402
    %v405 = vsel %vm180, %v401, 0
    %v408 = vsel %vm180, %v403, 0
    %410 = vmatprep.subr.bf16.mxu0 0
    %411 = vmatpush1.bf16.xpose.msra.mxu0 %v408
    %412 = vmatprep.subr.bf16.mxu0 0
    %413 = vmatpush1.bf16.xpose.msra.mxu0 0
    %414 = vmatprep.subr.bf16.mxu0 0
    %415 = vmatpush1.bf16.xpose.msra.mxu0 0
    %416 = vmatprep.subr.bf16.mxu0 0
    %417 = vmatpush1.bf16.xpose.msra.mxu0 0
    %418 = vmatprep.subr.bf16.mxu0 0
    %419 = vmatpush1.bf16.xpose.msra.mxu0 0
    %420 = vmatprep.subr.bf16.mxu0 0
    %421 = vmatpush1.bf16.xpose.msra.mxu0 0
    %422 = vmatprep.subr.bf16.mxu0 0
    %423 = vmatpush1.bf16.xpose.msra.mxu0 0
    %424 = vmatprep.subr.bf16.mxu0 0
    %425 = vmatpush1.bf16.xpose.msra.mxu0 0
    %426 = vmatprep.subr.bf16.mxu0 0
    %427 = vmatpush1.bf16.xpose.msra.mxu0 0
    %428 = vmatprep.subr.bf16.mxu0 0
    %429 = vmatpush1.bf16.xpose.msra.mxu0 0
    %430 = vmatprep.subr.bf16.mxu0 0
    %431 = vmatpush1.bf16.xpose.msra.mxu0 0
    %432 = vmatprep.subr.bf16.mxu0 0
    %433 = vmatpush1.bf16.xpose.msra.mxu0 0
    %434 = vmatprep.subr.bf16.mxu0 0
    %435 = vmatpush1.bf16.xpose.msra.mxu0 0
    %436 = vmatprep.subr.bf16.mxu0 0
    %437 = vmatpush1.bf16.xpose.msra.mxu0 0
    %438 = vmatprep.subr.bf16.mxu0 0
    %439 = vmatpush1.bf16.xpose.msra.mxu0 0
    %440 = vmatprep.subr.bf16.mxu0 0
    %441 = vmatpush1.bf16.xpose.msra.mxu0 0
    %442 = vmatprep.mubr.bf16.mxu0 0
    %443 = vmatmul.mubr.bf16.gmra.mrb[0].mxu0 %v405
    %v444 = vpop.f32.mrb[0].mxu0
    %v445 = vadd.f32 %v99, %v444
    %v446 = vpop.f32.mrb[0].mxu0
    %v447 = vpop.f32.mrb[0].mxu0
    %v448 = vpop.f32.mrb[0].mxu0
    %449 = vdwg.mxu0
    %451 = vrot.lane.b32.xlu0 %v174, 112
    %v452 = vpop.permute.xlu0 %451
    %453 = vrot.lane.b32.xlu0 %v176, 80
    %v454 = vpop.permute.xlu0 %453
    %v456 = vsel %vm180, %v452, 0
    %v459 = vsel %vm180, %v454, 0
    %461 = vmatprep.subr.bf16.mxu0 0
    %462 = vmatpush1.bf16.xpose.msra.mxu0 %v459
    %463 = vmatprep.subr.bf16.mxu0 0
    %464 = vmatpush1.bf16.xpose.msra.mxu0 0
    %465 = vmatprep.subr.bf16.mxu0 0
    %466 = vmatpush1.bf16.xpose.msra.mxu0 0
    %467 = vmatprep.subr.bf16.mxu0 0
    %468 = vmatpush1.bf16.xpose.msra.mxu0 0
    %469 = vmatprep.subr.bf16.mxu0 0
    %470 = vmatpush1.bf16.xpose.msra.mxu0 0
    %471 = vmatprep.subr.bf16.mxu0 0
    %472 = vmatpush1.bf16.xpose.msra.mxu0 0
    %473 = vmatprep.subr.bf16.mxu0 0
    %474 = vmatpush1.bf16.xpose.msra.mxu0 0
    %475 = vmatprep.subr.bf16.mxu0 0
    %476 = vmatpush1.bf16.xpose.msra.mxu0 0
    %477 = vmatprep.subr.bf16.mxu0 0
    %478 = vmatpush1.bf16.xpose.msra.mxu0 0
    %479 = vmatprep.subr.bf16.mxu0 0
    %480 = vmatpush1.bf16.xpose.msra.mxu0 0
    %481 = vmatprep.subr.bf16.mxu0 0
    %482 = vmatpush1.bf16.xpose.msra.mxu0 0
    %483 = vmatprep.subr.bf16.mxu0 0
    %484 = vmatpush1.bf16.xpose.msra.mxu0 0
    %485 = vmatprep.subr.bf16.mxu0 0
    %486 = vmatpush1.bf16.xpose.msra.mxu0 0
    %487 = vmatprep.subr.bf16.mxu0 0
    %488 = vmatpush1.bf16.xpose.msra.mxu0 0
    %489 = vmatprep.subr.bf16.mxu0 0
    %490 = vmatpush1.bf16.xpose.msra.mxu0 0
    %491 = vmatprep.subr.bf16.mxu0 0
    %492 = vmatpush1.bf16.xpose.msra.mxu0 0
    %493 = vmatprep.mubr.bf16.mxu0 0
    %494 = vmatmul.mubr.bf16.gmra.mrb[0].mxu0 %v456
    %v495 = vpop.f32.mrb[0].mxu0
    %v496 = vadd.f32 %v103, %v495
    %v497 = vpop.f32.mrb[0].mxu0
    %v498 = vpop.f32.mrb[0].mxu0
    %v499 = vpop.f32.mrb[0].mxu0
    %500 = vdwg.mxu0
    %v501 = vsel %vm276, %v445, -inf
    %502 = vmax.xlane.f32.xlu0 %v501
    %v503 = vpop.xlane.xlu0 %502
    %v504 = vsel %vm276, %v496, -inf
    %505 = vmax.xlane.f32.xlu0 %v504
    %v506 = vpop.xlane.xlu0 %505
    %v507 = vsub.f32 %v445, %v503
    %v508 = vsub.f32 %v496, %v506
    %v509 = vmul.f32 %v507, 1.442695
    %v510 = vpow.pop %v509
    %v511 = vmul.f32 %v508, 1.442695
    %v512 = vpow.pop %v511
    %v513 = vsel %vm276, %v510, 0.0
    %514 = vadd.xlane.f32.xlu0 %v513
    %v515 = vpop.xlane.xlu0 %514
    %v516 = vsel %vm276, %v512, 0.0
    %517 = vadd.xlane.f32.xlu0 %v516
    %v518 = vpop.xlane.xlu0 %517
    %v519 = vrcp.pop %v515
    %v520 = vrcp.pop %v518
    %v521 = vmul.f32 %v510, %v519
    %v522 = vmul.f32 %v512, %v520
    %v523 = vpack.c.bf16 %v521, %v521
    %v524 = vpack.c.bf16 %v522, %v522
    %525 = vrot.lane.b32.xlu0 %v175, 48
    %v526 = vpop.permute.xlu0 %525
    %v528 = vsel %vm276, %v523, 0
    %v531 = vsel %vm306, %v526, 0
    %533 = vmatprep.subr.bf16.mxu0 0
    %534 = vmatpush1.bf16.msra.mxu0 %v531
    %535 = vmatprep.subr.bf16.mxu0 0
    %536 = vmatpush1.bf16.msra.mxu0 0
    %537 = vmatprep.subr.bf16.mxu0 0
    %538 = vmatpush1.bf16.msra.mxu0 0
    %539 = vmatprep.subr.bf16.mxu0 0
    %540 = vmatpush1.bf16.msra.mxu0 0
    %541 = vmatprep.subr.bf16.mxu0 0
    %542 = vmatpush1.bf16.msra.mxu0 0
    %543 = vmatprep.subr.bf16.mxu0 0
    %544 = vmatpush1.bf16.msra.mxu0 0
    %545 = vmatprep.subr.bf16.mxu0 0
    %546 = vmatpush1.bf16.msra.mxu0 0
    %547 = vmatprep.subr.bf16.mxu0 0
    %548 = vmatpush1.bf16.msra.mxu0 0
    %549 = vmatprep.subr.bf16.mxu0 0
    %550 = vmatpush1.bf16.msra.mxu0 0
    %551 = vmatprep.subr.bf16.mxu0 0
    %552 = vmatpush1.bf16.msra.mxu0 0
    %553 = vmatprep.subr.bf16.mxu0 0
    %554 = vmatpush1.bf16.msra.mxu0 0
    %555 = vmatprep.subr.bf16.mxu0 0
    %556 = vmatpush1.bf16.msra.mxu0 0
    %557 = vmatprep.subr.bf16.mxu0 0
    %558 = vmatpush1.bf16.msra.mxu0 0
    %559 = vmatprep.subr.bf16.mxu0 0
    %560 = vmatpush1.bf16.msra.mxu0 0
    %561 = vmatprep.subr.bf16.mxu0 0
    %562 = vmatpush1.bf16.msra.mxu0 0
    %563 = vmatprep.subr.bf16.mxu0 0
    %564 = vmatpush1.bf16.msra.mxu0 0
    %565 = vmatprep.mubr.bf16.mxu0 0
    %566 = vmatmul.mubr.bf16.gmra.mrb[0].mxu0 %v528
    %v567 = vpop.f32.mrb[0].mxu0
    %v568 = vadd.f32 0.0, %v567
    %v569 = vpop.f32.mrb[0].mxu0
    %v570 = vpop.f32.mrb[0].mxu0
    %v571 = vpop.f32.mrb[0].mxu0
    %572 = vdwg.mxu0
    %573 = vrot.lane.b32.xlu0 %v176, 48
    %v574 = vpop.permute.xlu0 %573
    %v576 = vsel %vm276, %v524, 0
    %v579 = vsel %vm306, %v574, 0
    %581 = vmatprep.subr.bf16.mxu0 0
    %582 = vmatpush1.bf16.msra.mxu0 %v579
    %583 = vmatprep.subr.bf16.mxu0 0
    %584 = vmatpush1.bf16.msra.mxu0 0
    %585 = vmatprep.subr.bf16.mxu0 0
    %586 = vmatpush1.bf16.msra.mxu0 0
    %587 = vmatprep.subr.bf16.mxu0 0
    %588 = vmatpush1.bf16.msra.mxu0 0
    %589 = vmatprep.subr.bf16.mxu0 0
    %590 = vmatpush1.bf16.msra.mxu0 0
    %591 = vmatprep.subr.bf16.mxu0 0
    %592 = vmatpush1.bf16.msra.mxu0 0
    %593 = vmatprep.subr.bf16.mxu0 0
    %594 = vmatpush1.bf16.msra.mxu0 0
    %595 = vmatprep.subr.bf16.mxu0 0
    %596 = vmatpush1.bf16.msra.mxu0 0
    %597 = vmatprep.subr.bf16.mxu0 0
    %598 = vmatpush1.bf16.msra.mxu0 0
    %599 = vmatprep.subr.bf16.mxu0 0
    %600 = vmatpush1.bf16.msra.mxu0 0
    %601 = vmatprep.subr.bf16.mxu0 0
    %602 = vmatpush1.bf16.msra.mxu0 0
    %603 = vmatprep.subr.bf16.mxu0 0
    %604 = vmatpush1.bf16.msra.mxu0 0
    %605 = vmatprep.subr.bf16.mxu0 0
    %606 = vmatpush1.bf16.msra.mxu0 0
    %607 = vmatprep.subr.bf16.mxu0 0
    %608 = vmatpush1.bf16.msra.mxu0 0
    %609 = vmatprep.subr.bf16.mxu0 0
    %610 = vmatpush1.bf16.msra.mxu0 0
    %611 = vmatprep.subr.bf16.mxu0 0
    %612 = vmatpush1.bf16.msra.mxu0 0
    %613 = vmatprep.mubr.bf16.mxu0 0
    %614 = vmatmul.mubr.bf16.gmra.mrb[0].mxu0 %v576
    %v615 = vpop.f32.mrb[0].mxu0
    %v616 = vadd.f32 0.0, %v615
    %v617 = vpop.f32.mrb[0].mxu0
    %v618 = vpop.f32.mrb[0].mxu0
    %v619 = vpop.f32.mrb[0].mxu0
    %620 = vdwg.mxu0
    %v621 = vpack.c.bf16 %v616, %v568
    %v624 = vunpack.c.l.b16 %v169
    %v625 = vunpack.c.l.b16 %v170
    %v626 = vpack.c.b16 %v625, %v624
    %v629 = vsel %vm180, %v621, 0
    %631 = vmatprep.subr.bf16.mxu0 0
    %632 = vmatpush1.bf16.msra.mxu0 %v626
    %633 = vmatprep.subr.bf16.mxu0 0
    %634 = vmatpush1.bf16.msra.mxu0 0
    %635 = vmatprep.subr.bf16.mxu0 0
    %636 = vmatpush1.bf16.msra.mxu0 0
    %637 = vmatprep.subr.bf16.mxu0 0
    %638 = vmatpush1.bf16.msra.mxu0 0
    %639 = vmatprep.subr.bf16.mxu0 0
    %640 = vmatpush1.bf16.msra.mxu0 0
    %641 = vmatprep.subr.bf16.mxu0 0
    %642 = vmatpush1.bf16.msra.mxu0 0
    %643 = vmatprep.subr.bf16.mxu0 0
    %644 = vmatpush1.bf16.msra.mxu0 0
    %645 = vmatprep.subr.bf16.mxu0 0
    %646 = vmatpush1.bf16.msra.mxu0 0
    %647 = vmatprep.subr.bf16.mxu0 0
    %648 = vmatpush1.bf16.msra.mxu0 0
    %649 = vmatprep.subr.bf16.mxu0 0
    %650 = vmatpush1.bf16.msra.mxu0 0
    %651 = vmatprep.subr.bf16.mxu0 0
    %652 = vmatpush1.bf16.msra.mxu0 0
    %653 = vmatprep.subr.bf16.mxu0 0
    %654 = vmatpush1.bf16.msra.mxu0 0
    %655 = vmatprep.subr.bf16.mxu0 0
    %656 = vmatpush1.bf16.msra.mxu0 0
    %657 = vmatprep.subr.bf16.mxu0 0
    %658 = vmatpush1.bf16.msra.mxu0 0
    %659 = vmatprep.subr.bf16.mxu0 0
    %660 = vmatpush1.bf16.msra.mxu0 0
    %661 = vmatprep.subr.bf16.mxu0 0
    %662 = vmatpush1.bf16.msra.mxu0 0
    %663 = vmatprep.mubr.bf16.mxu0 0
    %664 = vmatmul.mubr.bf16.gmra.mrb[0].mxu0 %v629
    %v665 = vpop.f32.mrb[0].mxu0
    %v666 = vadd.f32 0.0, %v665
    %v667 = vpop.f32.mrb[0].mxu0
    %v668 = vpop.f32.mrb[0].mxu0
    %v669 = vadd.f32 0.0, %v668
    %v670 = vpop.f32.mrb[0].mxu0
    %671 = vdwg.mxu0
    %v674 = vunpack.c.l.b16 %v167
    %v675 = vunpack.c.l.b16 %v168
    %v676 = vpack.c.b16 %v675, %v674
    %v679 = vsel %vm180, %v398, 0
    %681 = vmatprep.subr.bf16.mxu0 0
    %682 = vmatpush1.bf16.msra.mxu0 %v676
    %683 = vmatprep.subr.bf16.mxu0 0
    %684 = vmatpush1.bf16.msra.mxu0 0
    %685 = vmatprep.subr.bf16.mxu0 0
    %686 = vmatpush1.bf16.msra.mxu0 0
    %687 = vmatprep.subr.bf16.mxu0 0
    %688 = vmatpush1.bf16.msra.mxu0 0
    %689 = vmatprep.subr.bf16.mxu0 0
    %690 = vmatpush1.bf16.msra.mxu0 0
    %691 = vmatprep.subr.bf16.mxu0 0
    %692 = vmatpush1.bf16.msra.mxu0 0
    %693 = vmatprep.subr.bf16.mxu0 0
    %694 = vmatpush1.bf16.msra.mxu0 0
    %695 = vmatprep.subr.bf16.mxu0 0
    %696 = vmatpush1.bf16.msra.mxu0 0
    %697 = vmatprep.subr.bf16.mxu0 0
    %698 = vmatpush1.bf16.msra.mxu0 0
    %699 = vmatprep.subr.bf16.mxu0 0
    %700 = vmatpush1.bf16.msra.mxu0 0
    %701 = vmatprep.subr.bf16.mxu0 0
    %702 = vmatpush1.bf16.msra.mxu0 0
    %703 = vmatprep.subr.bf16.mxu0 0
    %704 = vmatpush1.bf16.msra.mxu0 0
    %705 = vmatprep.subr.bf16.mxu0 0
    %706 = vmatpush1.bf16.msra.mxu0 0
    %707 = vmatprep.subr.bf16.mxu0 0
    %708 = vmatpush1.bf16.msra.mxu0 0
    %709 = vmatprep.subr.bf16.mxu0 0
    %710 = vmatpush1.bf16.msra.mxu0 0
    %711 = vmatprep.subr.bf16.mxu0 0
    %712 = vmatpush1.bf16.msra.mxu0 0
    %713 = vmatprep.mubr.bf16.mxu0 0
    %714 = vmatmul.mubr.bf16.gmra.mrb[0].mxu0 %v679
    %v715 = vpop.f32.mrb[0].mxu0
    %v716 = vadd.f32 %v666, %v715
    %v717 = vpop.f32.mrb[0].mxu0
    %v718 = vpop.f32.mrb[0].mxu0
    %v719 = vadd.f32 %v669, %v718
    %v720 = vpop.f32.mrb[0].mxu0
    %721 = vdwg.mxu0
    %v722 = vld [vmem:[%s8] sm:$0x1f]
    %v723 = vadd.f32 %v716, %v90
    %v724 = vadd.f32 %v719, %v91
    %v725 = vsel %vm52, %v723, 0.0
    %726 = vadd.xlane.f32.xlu0 %v725
    %v727 = vpop.xlane.xlu0 %726
    %v728 = vsel %vm52, %v724, 0.0
    %729 = vadd.xlane.f32.xlu0 %v728
    %v730 = vpop.xlane.xlu0 %729
    %v731 = vmul.f32 %v727, %v59
    %v732 = vmul.f32 %v730, %v59
    %v733 = vsub.f32 %v723, %v731
    %v734 = vsub.f32 %v724, %v732
    %v735 = vmul.f32 %v733, %v733
    %v736 = vmul.f32 %v734, %v734
    %v737 = vsel %vm52, %v735, 0.0
    %738 = vadd.xlane.f32.xlu0 %v737
    %v739 = vpop.xlane.xlu0 %738
    %v740 = vsel %vm52, %v736, 0.0
    %741 = vadd.xlane.f32.xlu0 %v740
    %v742 = vpop.xlane.xlu0 %741
    %v743 = vmul.f32 %v739, %v59
    %v744 = vmul.f32 %v742, %v59
    %v745 = vadd.f32 %v743, 1e-06
    %v746 = vadd.f32 %v744, 1e-06
    %v747 = vrsqrt.pop %v745
    %v748 = vrsqrt.pop %v746
    %v749 = vmul.f32 %v733, %v747
    %v750 = vmul.f32 %v734, %v748
    %v751 = vlaneseq
    %v752 = vshrl.u32 %v751, 7
    %v753 = vsub.s32 1, %v752
    %v754 = vrot.slane %v722, %v753
    %v755 = vmul.f32 %v749, %v754
    %v756 = vmul.f32 %v750, %v754
    %v757 = vlaneseq
    %v758 = vshrl.u32 %v757, 7
    %v759 = vsub.s32 2, %v758
    %v760 = vrot.slane %v722, %v759
    %v761 = vadd.f32 %v755, %v760
    %v762 = vadd.f32 %v756, %v760
    %v763 = vpack.c.bf16 %v762, %v761
    %v764 = vld [vmem:[%s5] sm:$0xf]
    %v765 = vld [vmem:[%s5 + $0x4] sm:$0xf]
    %v766 = vld [vmem:[%s5 + $0x8] sm:$0xf]
    %v767 = vld [vmem:[%s5 + $0xc] sm:$0xf]
    %v768 = vld [vmem:[#allocation2] sm:$0x1]
    %v770 = vlaneseq
    %v771 = vshrl.u32 %v770, 7
    %v772 = vsub.s32 0, %v771
    %v773 = vrot.slane %v768, %v772
    %v779 = vunpack.c.l.b16 %v764
    %v780 = vunpack.c.l.b16 %v765
    %v781 = vunpack.c.l.b16 %v766
    %v782 = vunpack.c.l.b16 %v767
    %v783 = vpack.c.b16 %v780, %v779
    %v784 = vpack.c.b16 %v782, %v781
    %v788 = vsel %vm52, %v763, 0
    %790 = vmatprep.subr.bf16.mxu0 0
    %791 = vmatpush1.bf16.msra.mxu0 %v783
    %792 = vmatprep.subr.bf16.mxu0 0
    %793 = vmatpush1.bf16.msra.mxu0 %v784
    %794 = vmatprep.subr.bf16.mxu0 0
    %795 = vmatpush1.bf16.msra.mxu0 0
    %796 = vmatprep.subr.bf16.mxu0 0
    %797 = vmatpush1.bf16.msra.mxu0 0
    %798 = vmatprep.subr.bf16.mxu0 0
    %799 = vmatpush1.bf16.msra.mxu0 0
    %800 = vmatprep.subr.bf16.mxu0 0
    %801 = vmatpush1.bf16.msra.mxu0 0
    %802 = vmatprep.subr.bf16.mxu0 0
    %803 = vmatpush1.bf16.msra.mxu0 0
    %804 = vmatprep.subr.bf16.mxu0 0
    %805 = vmatpush1.bf16.msra.mxu0 0
    %806 = vmatprep.subr.bf16.mxu0 0
    %807 = vmatpush1.bf16.msra.mxu0 0
    %808 = vmatprep.subr.bf16.mxu0 0
    %809 = vmatpush1.bf16.msra.mxu0 0
    %810 = vmatprep.subr.bf16.mxu0 0
    %811 = vmatpush1.bf16.msra.mxu0 0
    %812 = vmatprep.subr.bf16.mxu0 0
    %813 = vmatpush1.bf16.msra.mxu0 0
    %814 = vmatprep.subr.bf16.mxu0 0
    %815 = vmatpush1.bf16.msra.mxu0 0
    %816 = vmatprep.subr.bf16.mxu0 0
    %817 = vmatpush1.bf16.msra.mxu0 0
    %818 = vmatprep.subr.bf16.mxu0 0
    %819 = vmatpush1.bf16.msra.mxu0 0
    %820 = vmatprep.subr.bf16.mxu0 0
    %821 = vmatpush1.bf16.msra.mxu0 0
    %822 = vmatprep.mubr.bf16.mxu0 0
    %823 = vmatmul.mubr.bf16.gmra.mrb[0].mxu0 %v788
    %v824 = vpop.f32.mrb[0].mxu0
    %v825 = vadd.f32 %v773, %v824
    %v826 = vpop.f32.mrb[0].mxu0
    %v827 = vpop.f32.mrb[0].mxu0
    %v828 = vadd.f32 %v773, %v827
    %v829 = vpop.f32.mrb[0].mxu0
    %830 = vdwg.mxu0
    %v831 = vmax.f32 %v825, 0.0
    %v832 = vmax.f32 %v828, 0.0
    %v833 = vpack.c.bf16 %v832, %v831
    %v834 = vld [vmem:[%s7] sm:$0xf]
    %v835 = vld [vmem:[%s7 + $0x4] sm:$0xf]
    %v836 = vld [vmem:[%s7 + $0x8] sm:$0xf]
    %v837 = vld [vmem:[%s7 + $0xc] sm:$0xf]
    %v838 = vld [vmem:[%s7 + $0x10] sm:$0xf]
    %v839 = vld [vmem:[%s7 + $0x14] sm:$0xf]
    %v840 = vld [vmem:[%s7 + $0x18] sm:$0xf]
    %v841 = vld [vmem:[%s7 + $0x1c] sm:$0xf]
    %v842 = vlaneseq
    %v843 = vshrl.u32 %v842, 7
    %v844 = vsub.s32 0, %v843
    %v845 = vrot.slane %v722, %v844
    %v854 = vunpack.c.l.b16 %v834
    %v855 = vunpack.c.l.b16 %v835
    %v856 = vunpack.c.l.b16 %v836
    %v857 = vunpack.c.l.b16 %v837
    %v858 = vunpack.c.l.b16 %v838
    %v859 = vunpack.c.l.b16 %v839
    %v860 = vunpack.c.l.b16 %v840
    %v861 = vunpack.c.l.b16 %v841
    %v862 = vpack.c.b16 %v855, %v854
    %v863 = vpack.c.b16 %v857, %v856
    %v864 = vpack.c.b16 %v859, %v858
    %v865 = vpack.c.b16 %v861, %v860
    %vm870 = vcmask 523264
    %v872 = vsel %vm870, %v833, 0
    %874 = vmatprep.subr.bf16.mxu0 0
    %875 = vmatpush1.bf16.msra.mxu0 %v862
    %876 = vmatprep.subr.bf16.mxu0 0
    %877 = vmatpush1.bf16.msra.mxu0 %v863
    %878 = vmatprep.subr.bf16.mxu0 0
    %879 = vmatpush1.bf16.msra.mxu0 %v864
    %880 = vmatprep.subr.bf16.mxu0 0
    %881 = vmatpush1.bf16.msra.mxu0 %v865
    %882 = vmatprep.subr.bf16.mxu0 0
    %883 = vmatpush1.bf16.msra.mxu0 0
    %884 = vmatprep.subr.bf16.mxu0 0
    %885 = vmatpush1.bf16.msra.mxu0 0
    %886 = vmatprep.subr.bf16.mxu0 0
    %887 = vmatpush1.bf16.msra.mxu0 0
    %888 = vmatprep.subr.bf16.mxu0 0
    %889 = vmatpush1.bf16.msra.mxu0 0
    %890 = vmatprep.subr.bf16.mxu0 0
    %891 = vmatpush1.bf16.msra.mxu0 0
    %892 = vmatprep.subr.bf16.mxu0 0
    %893 = vmatpush1.bf16.msra.mxu0 0
    %894 = vmatprep.subr.bf16.mxu0 0
    %895 = vmatpush1.bf16.msra.mxu0 0
    %896 = vmatprep.subr.bf16.mxu0 0
    %897 = vmatpush1.bf16.msra.mxu0 0
    %898 = vmatprep.subr.bf16.mxu0 0
    %899 = vmatpush1.bf16.msra.mxu0 0
    %900 = vmatprep.subr.bf16.mxu0 0
    %901 = vmatpush1.bf16.msra.mxu0 0
    %902 = vmatprep.subr.bf16.mxu0 0
    %903 = vmatpush1.bf16.msra.mxu0 0
    %904 = vmatprep.subr.bf16.mxu0 0
    %905 = vmatpush1.bf16.msra.mxu0 0
    %906 = vmatprep.mubr.bf16.mxu0 0
    %907 = vmatmul.mubr.bf16.gmra.mrb[0].mxu0 %v872
    %v908 = vpop.f32.mrb[0].mxu0
    %v909 = vadd.f32 %v845, %v908
    %v910 = vpop.f32.mrb[0].mxu0
    %v911 = vpop.f32.mrb[0].mxu0
    %v912 = vadd.f32 %v845, %v911
    %v913 = vpop.f32.mrb[0].mxu0
    %914 = vdwg.mxu0
    %v915 = vadd.f32 %v909, %v761
    %v916 = vadd.f32 %v912, %v762
    %v917 = vsel %vm52, %v915, 0.0
    %918 = vadd.xlane.f32.xlu0 %v917
    %v919 = vpop.xlane.xlu0 %918
    %v920 = vsel %vm52, %v916, 0.0
    %921 = vadd.xlane.f32.xlu0 %v920
    %v922 = vpop.xlane.xlu0 %921
    %v923 = vmul.f32 %v919, %v59
    %v924 = vmul.f32 %v922, %v59
    %v925 = vsub.f32 %v915, %v923
    %v926 = vsub.f32 %v916, %v924
    %v927 = vmul.f32 %v925, %v925
    %v928 = vmul.f32 %v926, %v926
    %v929 = vsel %vm52, %v927, 0.0
    %930 = vadd.xlane.f32.xlu0 %v929
    %v931 = vpop.xlane.xlu0 %930
    %v932 = vsel %vm52, %v928, 0.0
    %933 = vadd.xlane.f32.xlu0 %v932
    %v934 = vpop.xlane.xlu0 %933
    %v935 = vmul.f32 %v931, %v59
    %v936 = vmul.f32 %v934, %v59
    %v937 = vadd.f32 %v935, 1e-06
    %v938 = vadd.f32 %v936, 1e-06
    %v939 = vrsqrt.pop %v937
    %v940 = vrsqrt.pop %v938
    %v941 = vmul.f32 %v925, %v939
    %v942 = vmul.f32 %v926, %v940
    %v943 = vlaneseq
    %v944 = vshrl.u32 %v943, 7
    %v945 = vsub.s32 3, %v944
    %v946 = vrot.slane %v722, %v945
    %v947 = vmul.f32 %v941, %v946
    %v948 = vmul.f32 %v942, %v946
    %v949 = vlaneseq
    %v950 = vshrl.u32 %v949, 7
    %v951 = vsub.s32 4, %v950
    %v952 = vrot.slane %v722, %v951
    %v953 = vadd.f32 %v947, %v952
    %v954 = vadd.f32 %v948, %v952
    %v955 = vpack.c.bf16 %v954, %v953
    %s956 = scalar_lea.vmem %s3, 16
    %v957 = vld [vmem:[%s956] sm:$0xf]
    %v958 = vld [vmem:[%s956 + $0x4] sm:$0xf]
    %v959 = vld [vmem:[%s956 + $0x8] sm:$0xf]
    %v960 = vld [vmem:[%s956 + $0xc] sm:$0xf]
    %v965 = vunpack.c.l.b16 %v957
    %v966 = vunpack.c.l.b16 %v958
    %v967 = vunpack.c.l.b16 %v959
    %v968 = vunpack.c.l.b16 %v960
    %v969 = vpack.c.b16 %v966, %v965
    %v970 = vpack.c.b16 %v968, %v967
    %v974 = vsel %vm52, %v955, 0
    %976 = vmatprep.subr.bf16.mxu0 0
    %977 = vmatpush1.bf16.msra.mxu0 %v969
    %978 = vmatprep.subr.bf16.mxu0 0
    %979 = vmatpush1.bf16.msra.mxu0 %v970
    %980 = vmatprep.subr.bf16.mxu0 0
    %981 = vmatpush1.bf16.msra.mxu0 0
    %982 = vmatprep.subr.bf16.mxu0 0
    %983 = vmatpush1.bf16.msra.mxu0 0
    %984 = vmatprep.subr.bf16.mxu0 0
    %985 = vmatpush1.bf16.msra.mxu0 0
    %986 = vmatprep.subr.bf16.mxu0 0
    %987 = vmatpush1.bf16.msra.mxu0 0
    %988 = vmatprep.subr.bf16.mxu0 0
    %989 = vmatpush1.bf16.msra.mxu0 0
    %990 = vmatprep.subr.bf16.mxu0 0
    %991 = vmatpush1.bf16.msra.mxu0 0
    %992 = vmatprep.subr.bf16.mxu0 0
    %993 = vmatpush1.bf16.msra.mxu0 0
    %994 = vmatprep.subr.bf16.mxu0 0
    %995 = vmatpush1.bf16.msra.mxu0 0
    %996 = vmatprep.subr.bf16.mxu0 0
    %997 = vmatpush1.bf16.msra.mxu0 0
    %998 = vmatprep.subr.bf16.mxu0 0
    %999 = vmatpush1.bf16.msra.mxu0 0
    %1000 = vmatprep.subr.bf16.mxu0 0
    %1001 = vmatpush1.bf16.msra.mxu0 0
    %1002 = vmatprep.subr.bf16.mxu0 0
    %1003 = vmatpush1.bf16.msra.mxu0 0
    %1004 = vmatprep.subr.bf16.mxu0 0
    %1005 = vmatpush1.bf16.msra.mxu0 0
    %1006 = vmatprep.subr.bf16.mxu0 0
    %1007 = vmatpush1.bf16.msra.mxu0 0
    %1008 = vmatprep.mubr.bf16.mxu0 0
    %1009 = vmatmul.mubr.bf16.gmra.mrb[0].mxu0 %v974
    %v1010 = vpop.f32.mrb[0].mxu0
    %v1011 = vadd.f32 0.0, %v1010
    %v1012 = vpop.f32.mrb[0].mxu0
    %v1013 = vpop.f32.mrb[0].mxu0
    %v1014 = vadd.f32 0.0, %v1013
    %v1015 = vpop.f32.mrb[0].mxu0
    %1016 = vdwg.mxu0
    %s1017 = scalar_lea.vmem %s4, 16
    %v1018 = vld [vmem:[%s1017] sm:$0xf]
    %v1019 = vld [vmem:[%s1017 + $0x4] sm:$0xf]
    %v1020 = vld [vmem:[%s1017 + $0x8] sm:$0xf]
    %v1021 = vld [vmem:[%s1017 + $0xc] sm:$0xf]
    %v1022 = vmul.f32 %v1011, 0.25
    %v1023 = vmul.f32 %v1014, 0.25
    %v1024 = vpack.c.bf16 %v1022, %v1022
    %v1025 = vpack.c.bf16 %v1023, %v1023
    %v1026 = vpack.c.bf16 %v1011, %v1011
    %v1027 = vpack.c.bf16 %v1014, %v1014
    %1029 = vrot.lane.b32.xlu0 %v1026, 96
    %v1030 = vpop.permute.xlu0 %1029
    %v1032 = vsel %vm180, %v1024, 0
    %v1035 = vsel %vm180, %v1030, 0
    %1037 = vmatprep.subr.bf16.mxu0 0
    %1038 = vmatpush1.bf16.xpose.msra.mxu0 %v1035
    %1039 = vmatprep.subr.bf16.mxu0 0
    %1040 = vmatpush1.bf16.xpose.msra.mxu0 0
    %1041 = vmatprep.subr.bf16.mxu0 0
    %1042 = vmatpush1.bf16.xpose.msra.mxu0 0
    %1043 = vmatprep.subr.bf16.mxu0 0
    %1044 = vmatpush1.bf16.xpose.msra.mxu0 0
    %1045 = vmatprep.subr.bf16.mxu0 0
    %1046 = vmatpush1.bf16.xpose.msra.mxu0 0
    %1047 = vmatprep.subr.bf16.mxu0 0
    %1048 = vmatpush1.bf16.xpose.msra.mxu0 0
    %1049 = vmatprep.subr.bf16.mxu0 0
    %1050 = vmatpush1.bf16.xpose.msra.mxu0 0
    %1051 = vmatprep.subr.bf16.mxu0 0
    %1052 = vmatpush1.bf16.xpose.msra.mxu0 0
    %1053 = vmatprep.subr.bf16.mxu0 0
    %1054 = vmatpush1.bf16.xpose.msra.mxu0 0
    %1055 = vmatprep.subr.bf16.mxu0 0
    %1056 = vmatpush1.bf16.xpose.msra.mxu0 0
    %1057 = vmatprep.subr.bf16.mxu0 0
    %1058 = vmatpush1.bf16.xpose.msra.mxu0 0
    %1059 = vmatprep.subr.bf16.mxu0 0
    %1060 = vmatpush1.bf16.xpose.msra.mxu0 0
    %1061 = vmatprep.subr.bf16.mxu0 0
    %1062 = vmatpush1.bf16.xpose.msra.mxu0 0
    %1063 = vmatprep.subr.bf16.mxu0 0
    %1064 = vmatpush1.bf16.xpose.msra.mxu0 0
    %1065 = vmatprep.subr.bf16.mxu0 0
    %1066 = vmatpush1.bf16.xpose.msra.mxu0 0
    %1067 = vmatprep.subr.bf16.mxu0 0
    %1068 = vmatpush1.bf16.xpose.msra.mxu0 0
    %1069 = vmatprep.mubr.bf16.mxu0 0
    %1070 = vmatmul.mubr.bf16.gmra.mrb[0].mxu0 %v1032
    %v1071 = vpop.f32.mrb[0].mxu0
    %v1072 = vadd.f32 %v99, %v1071
    %v1073 = vpop.f32.mrb[0].mxu0
    %v1074 = vpop.f32.mrb[0].mxu0
    %v1075 = vpop.f32.mrb[0].mxu0
    %1076 = vdwg.mxu0
    %1078 = vrot.lane.b32.xlu0 %v1027, 96
    %v1079 = vpop.permute.xlu0 %1078
    %v1081 = vsel %vm180, %v1025, 0
    %v1084 = vsel %vm180, %v1079, 0
    %1086 = vmatprep.subr.bf16.mxu0 0
    %1087 = vmatpush1.bf16.xpose.msra.mxu0 %v1084
    %1088 = vmatprep.subr.bf16.mxu0 0
    %1089 = vmatpush1.bf16.xpose.msra.mxu0 0
    %1090 = vmatprep.subr.bf16.mxu0 0
    %1091 = vmatpush1.bf16.xpose.msra.mxu0 0
    %1092 = vmatprep.subr.bf16.mxu0 0
    %1093 = vmatpush1.bf16.xpose.msra.mxu0 0
    %1094 = vmatprep.subr.bf16.mxu0 0
    %1095 = vmatpush1.bf16.xpose.msra.mxu0 0
    %1096 = vmatprep.subr.bf16.mxu0 0
    %1097 = vmatpush1.bf16.xpose.msra.mxu0 0
    %1098 = vmatprep.subr.bf16.mxu0 0
    %1099 = vmatpush1.bf16.xpose.msra.mxu0 0
    %1100 = vmatprep.subr.bf16.mxu0 0
    %1101 = vmatpush1.bf16.xpose.msra.mxu0 0
    %1102 = vmatprep.subr.bf16.mxu0 0
    %1103 = vmatpush1.bf16.xpose.msra.mxu0 0
    %1104 = vmatprep.subr.bf16.mxu0 0
    %1105 = vmatpush1.bf16.xpose.msra.mxu0 0
    %1106 = vmatprep.subr.bf16.mxu0 0
    %1107 = vmatpush1.bf16.xpose.msra.mxu0 0
    %1108 = vmatprep.subr.bf16.mxu0 0
    %1109 = vmatpush1.bf16.xpose.msra.mxu0 0
    %1110 = vmatprep.subr.bf16.mxu0 0
    %1111 = vmatpush1.bf16.xpose.msra.mxu0 0
    %1112 = vmatprep.subr.bf16.mxu0 0
    %1113 = vmatpush1.bf16.xpose.msra.mxu0 0
    %1114 = vmatprep.subr.bf16.mxu0 0
    %1115 = vmatpush1.bf16.xpose.msra.mxu0 0
    %1116 = vmatprep.subr.bf16.mxu0 0
    %1117 = vmatpush1.bf16.xpose.msra.mxu0 0
    %1118 = vmatprep.mubr.bf16.mxu0 0
    %1119 = vmatmul.mubr.bf16.gmra.mrb[0].mxu0 %v1081
    %v1120 = vpop.f32.mrb[0].mxu0
    %v1121 = vadd.f32 %v103, %v1120
    %v1122 = vpop.f32.mrb[0].mxu0
    %v1123 = vpop.f32.mrb[0].mxu0
    %v1124 = vpop.f32.mrb[0].mxu0
    %1125 = vdwg.mxu0
    %v1126 = vsel %vm276, %v1072, -inf
    %1127 = vmax.xlane.f32.xlu0 %v1126
    %v1128 = vpop.xlane.xlu0 %1127
    %v1129 = vsel %vm276, %v1121, -inf
    %1130 = vmax.xlane.f32.xlu0 %v1129
    %v1131 = vpop.xlane.xlu0 %1130
    %v1132 = vsub.f32 %v1072, %v1128
    %v1133 = vsub.f32 %v1121, %v1131
    %v1134 = vmul.f32 %v1132, 1.442695
    %v1135 = vpow.pop %v1134
    %v1136 = vmul.f32 %v1133, 1.442695
    %v1137 = vpow.pop %v1136
    %v1138 = vsel %vm276, %v1135, 0.0
    %1139 = vadd.xlane.f32.xlu0 %v1138
    %v1140 = vpop.xlane.xlu0 %1139
    %v1141 = vsel %vm276, %v1137, 0.0
    %1142 = vadd.xlane.f32.xlu0 %v1141
    %v1143 = vpop.xlane.xlu0 %1142
    %v1144 = vrcp.pop %v1140
    %v1145 = vrcp.pop %v1143
    %v1146 = vmul.f32 %v1135, %v1144
    %v1147 = vmul.f32 %v1137, %v1145
    %v1148 = vpack.c.bf16 %v1146, %v1146
    %v1149 = vpack.c.bf16 %v1147, %v1147
    %1150 = vrot.lane.b32.xlu0 %v1026, 64
    %v1151 = vpop.permute.xlu0 %1150
    %v1153 = vsel %vm276, %v1148, 0
    %v1156 = vsel %vm306, %v1151, 0
    %1158 = vmatprep.subr.bf16.mxu0 0
    %1159 = vmatpush1.bf16.msra.mxu0 %v1156
    %1160 = vmatprep.subr.bf16.mxu0 0
    %1161 = vmatpush1.bf16.msra.mxu0 0
    %1162 = vmatprep.subr.bf16.mxu0 0
    %1163 = vmatpush1.bf16.msra.mxu0 0
    %1164 = vmatprep.subr.bf16.mxu0 0
    %1165 = vmatpush1.bf16.msra.mxu0 0
    %1166 = vmatprep.subr.bf16.mxu0 0
    %1167 = vmatpush1.bf16.msra.mxu0 0
    %1168 = vmatprep.subr.bf16.mxu0 0
    %1169 = vmatpush1.bf16.msra.mxu0 0
    %1170 = vmatprep.subr.bf16.mxu0 0
    %1171 = vmatpush1.bf16.msra.mxu0 0
    %1172 = vmatprep.subr.bf16.mxu0 0
    %1173 = vmatpush1.bf16.msra.mxu0 0
    %1174 = vmatprep.subr.bf16.mxu0 0
    %1175 = vmatpush1.bf16.msra.mxu0 0
    %1176 = vmatprep.subr.bf16.mxu0 0
    %1177 = vmatpush1.bf16.msra.mxu0 0
    %1178 = vmatprep.subr.bf16.mxu0 0
    %1179 = vmatpush1.bf16.msra.mxu0 0
    %1180 = vmatprep.subr.bf16.mxu0 0
    %1181 = vmatpush1.bf16.msra.mxu0 0
    %1182 = vmatprep.subr.bf16.mxu0 0
    %1183 = vmatpush1.bf16.msra.mxu0 0
    %1184 = vmatprep.subr.bf16.mxu0 0
    %1185 = vmatpush1.bf16.msra.mxu0 0
    %1186 = vmatprep.subr.bf16.mxu0 0
    %1187 = vmatpush1.bf16.msra.mxu0 0
    %1188 = vmatprep.subr.bf16.mxu0 0
    %1189 = vmatpush1.bf16.msra.mxu0 0
    %1190 = vmatprep.mubr.bf16.mxu0 0
    %1191 = vmatmul.mubr.bf16.gmra.mrb[0].mxu0 %v1153
    %v1192 = vpop.f32.mrb[0].mxu0
    %v1193 = vadd.f32 0.0, %v1192
    %v1194 = vpop.f32.mrb[0].mxu0
    %v1195 = vpop.f32.mrb[0].mxu0
    %v1196 = vpop.f32.mrb[0].mxu0
    %1197 = vdwg.mxu0
    %1198 = vrot.lane.b32.xlu0 %v1027, 64
    %v1199 = vpop.permute.xlu0 %1198
    %v1201 = vsel %vm276, %v1149, 0
    %v1204 = vsel %vm306, %v1199, 0
    %1206 = vmatprep.subr.bf16.mxu0 0
    %1207 = vmatpush1.bf16.msra.mxu0 %v1204
    %1208 = vmatprep.subr.bf16.mxu0 0
    %1209 = vmatpush1.bf16.msra.mxu0 0
    %1210 = vmatprep.subr.bf16.mxu0 0
    %1211 = vmatpush1.bf16.msra.mxu0 0
    %1212 = vmatprep.subr.bf16.mxu0 0
    %1213 = vmatpush1.bf16.msra.mxu0 0
    %1214 = vmatprep.subr.bf16.mxu0 0
    %1215 = vmatpush1.bf16.msra.mxu0 0
    %1216 = vmatprep.subr.bf16.mxu0 0
    %1217 = vmatpush1.bf16.msra.mxu0 0
    %1218 = vmatprep.subr.bf16.mxu0 0
    %1219 = vmatpush1.bf16.msra.mxu0 0
    %1220 = vmatprep.subr.bf16.mxu0 0
    %1221 = vmatpush1.bf16.msra.mxu0 0
    %1222 = vmatprep.subr.bf16.mxu0 0
    %1223 = vmatpush1.bf16.msra.mxu0 0
    %1224 = vmatprep.subr.bf16.mxu0 0
    %1225 = vmatpush1.bf16.msra.mxu0 0
    %1226 = vmatprep.subr.bf16.mxu0 0
    %1227 = vmatpush1.bf16.msra.mxu0 0
    %1228 = vmatprep.subr.bf16.mxu0 0
    %1229 = vmatpush1.bf16.msra.mxu0 0
    %1230 = vmatprep.subr.bf16.mxu0 0
    %1231 = vmatpush1.bf16.msra.mxu0 0
    %1232 = vmatprep.subr.bf16.mxu0 0
    %1233 = vmatpush1.bf16.msra.mxu0 0
    %1234 = vmatprep.subr.bf16.mxu0 0
    %1235 = vmatpush1.bf16.msra.mxu0 0
    %1236 = vmatprep.subr.bf16.mxu0 0
    %1237 = vmatpush1.bf16.msra.mxu0 0
    %1238 = vmatprep.mubr.bf16.mxu0 0
    %1239 = vmatmul.mubr.bf16.gmra.mrb[0].mxu0 %v1201
    %v1240 = vpop.f32.mrb[0].mxu0
    %v1241 = vadd.f32 0.0, %v1240
    %v1242 = vpop.f32.mrb[0].mxu0
    %v1243 = vpop.f32.mrb[0].mxu0
    %v1244 = vpop.f32.mrb[0].mxu0
    %1245 = vdwg.mxu0
    %v1246 = vpack.c.bf16 %v1241, %v1193
    %1248 = vrot.lane.b32.xlu0 %v1024, 112
    %v1249 = vpop.permute.xlu0 %1248
    %1250 = vrot.lane.b32.xlu0 %v1026, 80
    %v1251 = vpop.permute.xlu0 %1250
    %v1253 = vsel %vm180, %v1249, 0
    %v1256 = vsel %vm180, %v1251, 0
    %1258 = vmatprep.subr.bf16.mxu0 0
    %1259 = vmatpush1.bf16.xpose.msra.mxu0 %v1256
    %1260 = vmatprep.subr.bf16.mxu0 0
    %1261 = vmatpush1.bf16.xpose.msra.mxu0 0
    %1262 = vmatprep.subr.bf16.mxu0 0
    %1263 = vmatpush1.bf16.xpose.msra.mxu0 0
    %1264 = vmatprep.subr.bf16.mxu0 0
    %1265 = vmatpush1.bf16.xpose.msra.mxu0 0
    %1266 = vmatprep.subr.bf16.mxu0 0
    %1267 = vmatpush1.bf16.xpose.msra.mxu0 0
    %1268 = vmatprep.subr.bf16.mxu0 0
    %1269 = vmatpush1.bf16.xpose.msra.mxu0 0
    %1270 = vmatprep.subr.bf16.mxu0 0
    %1271 = vmatpush1.bf16.xpose.msra.mxu0 0
    %1272 = vmatprep.subr.bf16.mxu0 0
    %1273 = vmatpush1.bf16.xpose.msra.mxu0 0
    %1274 = vmatprep.subr.bf16.mxu0 0
    %1275 = vmatpush1.bf16.xpose.msra.mxu0 0
    %1276 = vmatprep.subr.bf16.mxu0 0
    %1277 = vmatpush1.bf16.xpose.msra.mxu0 0
    %1278 = vmatprep.subr.bf16.mxu0 0
    %1279 = vmatpush1.bf16.xpose.msra.mxu0 0
    %1280 = vmatprep.subr.bf16.mxu0 0
    %1281 = vmatpush1.bf16.xpose.msra.mxu0 0
    %1282 = vmatprep.subr.bf16.mxu0 0
    %1283 = vmatpush1.bf16.xpose.msra.mxu0 0
    %1284 = vmatprep.subr.bf16.mxu0 0
    %1285 = vmatpush1.bf16.xpose.msra.mxu0 0
    %1286 = vmatprep.subr.bf16.mxu0 0
    %1287 = vmatpush1.bf16.xpose.msra.mxu0 0
    %1288 = vmatprep.subr.bf16.mxu0 0
    %1289 = vmatpush1.bf16.xpose.msra.mxu0 0
    %1290 = vmatprep.mubr.bf16.mxu0 0
    %1291 = vmatmul.mubr.bf16.gmra.mrb[0].mxu0 %v1253
    %v1292 = vpop.f32.mrb[0].mxu0
    %v1293 = vadd.f32 %v99, %v1292
    %v1294 = vpop.f32.mrb[0].mxu0
    %v1295 = vpop.f32.mrb[0].mxu0
    %v1296 = vpop.f32.mrb[0].mxu0
    %1297 = vdwg.mxu0
    %1299 = vrot.lane.b32.xlu0 %v1025, 112
    %v1300 = vpop.permute.xlu0 %1299
    %1301 = vrot.lane.b32.xlu0 %v1027, 80
    %v1302 = vpop.permute.xlu0 %1301
    %v1304 = vsel %vm180, %v1300, 0
    %v1307 = vsel %vm180, %v1302, 0
    %1309 = vmatprep.subr.bf16.mxu0 0
    %1310 = vmatpush1.bf16.xpose.msra.mxu0 %v1307
    %1311 = vmatprep.subr.bf16.mxu0 0
    %1312 = vmatpush1.bf16.xpose.msra.mxu0 0
    %1313 = vmatprep.subr.bf16.mxu0 0
    %1314 = vmatpush1.bf16.xpose.msra.mxu0 0
    %1315 = vmatprep.subr.bf16.mxu0 0
    %1316 = vmatpush1.bf16.xpose.msra.mxu0 0
    %1317 = vmatprep.subr.bf16.mxu0 0
    %1318 = vmatpush1.bf16.xpose.msra.mxu0 0
    %1319 = vmatprep.subr.bf16.mxu0 0
    %1320 = vmatpush1.bf16.xpose.msra.mxu0 0
    %1321 = vmatprep.subr.bf16.mxu0 0
    %1322 = vmatpush1.bf16.xpose.msra.mxu0 0
    %1323 = vmatprep.subr.bf16.mxu0 0
    %1324 = vmatpush1.bf16.xpose.msra.mxu0 0
    %1325 = vmatprep.subr.bf16.mxu0 0
    %1326 = vmatpush1.bf16.xpose.msra.mxu0 0
    %1327 = vmatprep.subr.bf16.mxu0 0
    %1328 = vmatpush1.bf16.xpose.msra.mxu0 0
    %1329 = vmatprep.subr.bf16.mxu0 0
    %1330 = vmatpush1.bf16.xpose.msra.mxu0 0
    %1331 = vmatprep.subr.bf16.mxu0 0
    %1332 = vmatpush1.bf16.xpose.msra.mxu0 0
    %1333 = vmatprep.subr.bf16.mxu0 0
    %1334 = vmatpush1.bf16.xpose.msra.mxu0 0
    %1335 = vmatprep.subr.bf16.mxu0 0
    %1336 = vmatpush1.bf16.xpose.msra.mxu0 0
    %1337 = vmatprep.subr.bf16.mxu0 0
    %1338 = vmatpush1.bf16.xpose.msra.mxu0 0
    %1339 = vmatprep.subr.bf16.mxu0 0
    %1340 = vmatpush1.bf16.xpose.msra.mxu0 0
    %1341 = vmatprep.mubr.bf16.mxu0 0
    %1342 = vmatmul.mubr.bf16.gmra.mrb[0].mxu0 %v1304
    %v1343 = vpop.f32.mrb[0].mxu0
    %v1344 = vadd.f32 %v103, %v1343
    %v1345 = vpop.f32.mrb[0].mxu0
    %v1346 = vpop.f32.mrb[0].mxu0
    %v1347 = vpop.f32.mrb[0].mxu0
    %1348 = vdwg.mxu0
    %v1349 = vsel %vm276, %v1293, -inf
    %1350 = vmax.xlane.f32.xlu0 %v1349
    %v1351 = vpop.xlane.xlu0 %1350
    %v1352 = vsel %vm276, %v1344, -inf
    %1353 = vmax.xlane.f32.xlu0 %v1352
    %v1354 = vpop.xlane.xlu0 %1353
    %v1355 = vsub.f32 %v1293, %v1351
    %v1356 = vsub.f32 %v1344, %v1354
    %v1357 = vmul.f32 %v1355, 1.442695
    %v1358 = vpow.pop %v1357
    %v1359 = vmul.f32 %v1356, 1.442695
    %v1360 = vpow.pop %v1359
    %v1361 = vsel %vm276, %v1358, 0.0
    %1362 = vadd.xlane.f32.xlu0 %v1361
    %v1363 = vpop.xlane.xlu0 %1362
    %v1364 = vsel %vm276, %v1360, 0.0
    %1365 = vadd.xlane.f32.xlu0 %v1364
    %v1366 = vpop.xlane.xlu0 %1365
    %v1367 = vrcp.pop %v1363
    %v1368 = vrcp.pop %v1366
    %v1369 = vmul.f32 %v1358, %v1367
    %v1370 = vmul.f32 %v1360, %v1368
    %v1371 = vpack.c.bf16 %v1369, %v1369
    %v1372 = vpack.c.bf16 %v1370, %v1370
    %1373 = vrot.lane.b32.xlu0 %v1026, 48
    %v1374 = vpop.permute.xlu0 %1373
    %v1376 = vsel %vm276, %v1371, 0
    %v1379 = vsel %vm306, %v1374, 0
    %1381 = vmatprep.subr.bf16.mxu0 0
    %1382 = vmatpush1.bf16.msra.mxu0 %v1379
    %1383 = vmatprep.subr.bf16.mxu0 0
    %1384 = vmatpush1.bf16.msra.mxu0 0
    %1385 = vmatprep.subr.bf16.mxu0 0
    %1386 = vmatpush1.bf16.msra.mxu0 0
    %1387 = vmatprep.subr.bf16.mxu0 0
    %1388 = vmatpush1.bf16.msra.mxu0 0
    %1389 = vmatprep.subr.bf16.mxu0 0
    %1390 = vmatpush1.bf16.msra.mxu0 0
    %1391 = vmatprep.subr.bf16.mxu0 0
    %1392 = vmatpush1.bf16.msra.mxu0 0
    %1393 = vmatprep.subr.bf16.mxu0 0
    %1394 = vmatpush1.bf16.msra.mxu0 0
    %1395 = vmatprep.subr.bf16.mxu0 0
    %1396 = vmatpush1.bf16.msra.mxu0 0
    %1397 = vmatprep.subr.bf16.mxu0 0
    %1398 = vmatpush1.bf16.msra.mxu0 0
    %1399 = vmatprep.subr.bf16.mxu0 0
    %1400 = vmatpush1.bf16.msra.mxu0 0
    %1401 = vmatprep.subr.bf16.mxu0 0
    %1402 = vmatpush1.bf16.msra.mxu0 0
    %1403 = vmatprep.subr.bf16.mxu0 0
    %1404 = vmatpush1.bf16.msra.mxu0 0
    %1405 = vmatprep.subr.bf16.mxu0 0
    %1406 = vmatpush1.bf16.msra.mxu0 0
    %1407 = vmatprep.subr.bf16.mxu0 0
    %1408 = vmatpush1.bf16.msra.mxu0 0
    %1409 = vmatprep.subr.bf16.mxu0 0
    %1410 = vmatpush1.bf16.msra.mxu0 0
    %1411 = vmatprep.subr.bf16.mxu0 0
    %1412 = vmatpush1.bf16.msra.mxu0 0
    %1413 = vmatprep.mubr.bf16.mxu0 0
    %1414 = vmatmul.mubr.bf16.gmra.mrb[0].mxu0 %v1376
    %v1415 = vpop.f32.mrb[0].mxu0
    %v1416 = vadd.f32 0.0, %v1415
    %v1417 = vpop.f32.mrb[0].mxu0
    %v1418 = vpop.f32.mrb[0].mxu0
    %v1419 = vpop.f32.mrb[0].mxu0
    %1420 = vdwg.mxu0
    %1421 = vrot.lane.b32.xlu0 %v1027, 48
    %v1422 = vpop.permute.xlu0 %1421
    %v1424 = vsel %vm276, %v1372, 0
    %v1427 = vsel %vm306, %v1422, 0
    %1429 = vmatprep.subr.bf16.mxu0 0
    %1430 = vmatpush1.bf16.msra.mxu0 %v1427
    %1431 = vmatprep.subr.bf16.mxu0 0
    %1432 = vmatpush1.bf16.msra.mxu0 0
    %1433 = vmatprep.subr.bf16.mxu0 0
    %1434 = vmatpush1.bf16.msra.mxu0 0
    %1435 = vmatprep.subr.bf16.mxu0 0
    %1436 = vmatpush1.bf16.msra.mxu0 0
    %1437 = vmatprep.subr.bf16.mxu0 0
    %1438 = vmatpush1.bf16.msra.mxu0 0
    %1439 = vmatprep.subr.bf16.mxu0 0
    %1440 = vmatpush1.bf16.msra.mxu0 0
    %1441 = vmatprep.subr.bf16.mxu0 0
    %1442 = vmatpush1.bf16.msra.mxu0 0
    %1443 = vmatprep.subr.bf16.mxu0 0
    %1444 = vmatpush1.bf16.msra.mxu0 0
    %1445 = vmatprep.subr.bf16.mxu0 0
    %1446 = vmatpush1.bf16.msra.mxu0 0
    %1447 = vmatprep.subr.bf16.mxu0 0
    %1448 = vmatpush1.bf16.msra.mxu0 0
    %1449 = vmatprep.subr.bf16.mxu0 0
    %1450 = vmatpush1.bf16.msra.mxu0 0
    %1451 = vmatprep.subr.bf16.mxu0 0
    %1452 = vmatpush1.bf16.msra.mxu0 0
    %1453 = vmatprep.subr.bf16.mxu0 0
    %1454 = vmatpush1.bf16.msra.mxu0 0
    %1455 = vmatprep.subr.bf16.mxu0 0
    %1456 = vmatpush1.bf16.msra.mxu0 0
    %1457 = vmatprep.subr.bf16.mxu0 0
    %1458 = vmatpush1.bf16.msra.mxu0 0
    %1459 = vmatprep.subr.bf16.mxu0 0
    %1460 = vmatpush1.bf16.msra.mxu0 0
    %1461 = vmatprep.mubr.bf16.mxu0 0
    %1462 = vmatmul.mubr.bf16.gmra.mrb[0].mxu0 %v1424
    %v1463 = vpop.f32.mrb[0].mxu0
    %v1464 = vadd.f32 0.0, %v1463
    %v1465 = vpop.f32.mrb[0].mxu0
    %v1466 = vpop.f32.mrb[0].mxu0
    %v1467 = vpop.f32.mrb[0].mxu0
    %1468 = vdwg.mxu0
    %v1469 = vpack.c.bf16 %v1464, %v1416
    %v1472 = vunpack.c.l.b16 %v1020
    %v1473 = vunpack.c.l.b16 %v1021
    %v1474 = vpack.c.b16 %v1473, %v1472
    %v1477 = vsel %vm180, %v1469, 0
    %1479 = vmatprep.subr.bf16.mxu0 0
    %1480 = vmatpush1.bf16.msra.mxu0 %v1474
    %1481 = vmatprep.subr.bf16.mxu0 0
    %1482 = vmatpush1.bf16.msra.mxu0 0
    %1483 = vmatprep.subr.bf16.mxu0 0
    %1484 = vmatpush1.bf16.msra.mxu0 0
    %1485 = vmatprep.subr.bf16.mxu0 0
    %1486 = vmatpush1.bf16.msra.mxu0 0
    %1487 = vmatprep.subr.bf16.mxu0 0
    %1488 = vmatpush1.bf16.msra.mxu0 0
    %1489 = vmatprep.subr.bf16.mxu0 0
    %1490 = vmatpush1.bf16.msra.mxu0 0
    %1491 = vmatprep.subr.bf16.mxu0 0
    %1492 = vmatpush1.bf16.msra.mxu0 0
    %1493 = vmatprep.subr.bf16.mxu0 0
    %1494 = vmatpush1.bf16.msra.mxu0 0
    %1495 = vmatprep.subr.bf16.mxu0 0
    %1496 = vmatpush1.bf16.msra.mxu0 0
    %1497 = vmatprep.subr.bf16.mxu0 0
    %1498 = vmatpush1.bf16.msra.mxu0 0
    %1499 = vmatprep.subr.bf16.mxu0 0
    %1500 = vmatpush1.bf16.msra.mxu0 0
    %1501 = vmatprep.subr.bf16.mxu0 0
    %1502 = vmatpush1.bf16.msra.mxu0 0
    %1503 = vmatprep.subr.bf16.mxu0 0
    %1504 = vmatpush1.bf16.msra.mxu0 0
    %1505 = vmatprep.subr.bf16.mxu0 0
    %1506 = vmatpush1.bf16.msra.mxu0 0
    %1507 = vmatprep.subr.bf16.mxu0 0
    %1508 = vmatpush1.bf16.msra.mxu0 0
    %1509 = vmatprep.subr.bf16.mxu0 0
    %1510 = vmatpush1.bf16.msra.mxu0 0
    %1511 = vmatprep.mubr.bf16.mxu0 0
    %1512 = vmatmul.mubr.bf16.gmra.mrb[0].mxu0 %v1477
    %v1513 = vpop.f32.mrb[0].mxu0
    %v1514 = vadd.f32 0.0, %v1513
    %v1515 = vpop.f32.mrb[0].mxu0
    %v1516 = vpop.f32.mrb[0].mxu0
    %v1517 = vadd.f32 0.0, %v1516
    %v1518 = vpop.f32.mrb[0].mxu0
    %1519 = vdwg.mxu0
    %v1522 = vunpack.c.l.b16 %v1018
    %v1523 = vunpack.c.l.b16 %v1019
    %v1524 = vpack.c.b16 %v1523, %v1522
    %v1527 = vsel %vm180, %v1246, 0
    %1529 = vmatprep.subr.bf16.mxu0 0
    %1530 = vmatpush1.bf16.msra.mxu0 %v1524
    %1531 = vmatprep.subr.bf16.mxu0 0
    %1532 = vmatpush1.bf16.msra.mxu0 0
    %1533 = vmatprep.subr.bf16.mxu0 0
    %1534 = vmatpush1.bf16.msra.mxu0 0
    %1535 = vmatprep.subr.bf16.mxu0 0
    %1536 = vmatpush1.bf16.msra.mxu0 0
    %1537 = vmatprep.subr.bf16.mxu0 0
    %1538 = vmatpush1.bf16.msra.mxu0 0
    %1539 = vmatprep.subr.bf16.mxu0 0
    %1540 = vmatpush1.bf16.msra.mxu0 0
    %1541 = vmatprep.subr.bf16.mxu0 0
    %1542 = vmatpush1.bf16.msra.mxu0 0
    %1543 = vmatprep.subr.bf16.mxu0 0
    %1544 = vmatpush1.bf16.msra.mxu0 0
    %1545 = vmatprep.subr.bf16.mxu0 0
    %1546 = vmatpush1.bf16.msra.mxu0 0
    %1547 = vmatprep.subr.bf16.mxu0 0
    %1548 = vmatpush1.bf16.msra.mxu0 0
    %1549 = vmatprep.subr.bf16.mxu0 0
    %1550 = vmatpush1.bf16.msra.mxu0 0
    %1551 = vmatprep.subr.bf16.mxu0 0
    %1552 = vmatpush1.bf16.msra.mxu0 0
    %1553 = vmatprep.subr.bf16.mxu0 0
    %1554 = vmatpush1.bf16.msra.mxu0 0
    %1555 = vmatprep.subr.bf16.mxu0 0
    %1556 = vmatpush1.bf16.msra.mxu0 0
    %1557 = vmatprep.subr.bf16.mxu0 0
    %1558 = vmatpush1.bf16.msra.mxu0 0
    %1559 = vmatprep.subr.bf16.mxu0 0
    %1560 = vmatpush1.bf16.msra.mxu0 0
    %1561 = vmatprep.mubr.bf16.mxu0 0
    %1562 = vmatmul.mubr.bf16.gmra.mrb[0].mxu0 %v1527
    %v1563 = vpop.f32.mrb[0].mxu0
    %v1564 = vadd.f32 %v1514, %v1563
    %v1565 = vpop.f32.mrb[0].mxu0
    %v1566 = vpop.f32.mrb[0].mxu0
    %v1567 = vadd.f32 %v1517, %v1566
    %v1568 = vpop.f32.mrb[0].mxu0
    %1569 = vdwg.mxu0
    %s1570 = scalar_lea.vmem %s8, 8
    %v1571 = vld [vmem:[%s1570] sm:$0x1f]
    %v1572 = vadd.f32 %v1564, %v953
    %v1573 = vadd.f32 %v1567, %v954
    %v1574 = vsel %vm52, %v1572, 0.0
    %1575 = vadd.xlane.f32.xlu0 %v1574
    %v1576 = vpop.xlane.xlu0 %1575
    %v1577 = vsel %vm52, %v1573, 0.0
    %1578 = vadd.xlane.f32.xlu0 %v1577
    %v1579 = vpop.xlane.xlu0 %1578
    %v1580 = vmul.f32 %v1576, %v59
    %v1581 = vmul.f32 %v1579, %v59
    %v1582 = vsub.f32 %v1572, %v1580
    %v1583 = vsub.f32 %v1573, %v1581
    %v1584 = vmul.f32 %v1582, %v1582
    %v1585 = vmul.f32 %v1583, %v1583
    %v1586 = vsel %vm52, %v1584, 0.0
    %1587 = vadd.xlane.f32.xlu0 %v1586
    %v1588 = vpop.xlane.xlu0 %1587
    %v1589 = vsel %vm52, %v1585, 0.0
    %1590 = vadd.xlane.f32.xlu0 %v1589
    %v1591 = vpop.xlane.xlu0 %1590
    %v1592 = vmul.f32 %v1588, %v59
    %v1593 = vmul.f32 %v1591, %v59
    %v1594 = vadd.f32 %v1592, 1e-06
    %v1595 = vadd.f32 %v1593, 1e-06
    %v1596 = vrsqrt.pop %v1594
    %v1597 = vrsqrt.pop %v1595
    %v1598 = vmul.f32 %v1582, %v1596
    %v1599 = vmul.f32 %v1583, %v1597
    %v1600 = vlaneseq
    %v1601 = vshrl.u32 %v1600, 7
    %v1602 = vsub.s32 1, %v1601
    %v1603 = vrot.slane %v1571, %v1602
    %v1604 = vmul.f32 %v1598, %v1603
    %v1605 = vmul.f32 %v1599, %v1603
    %v1606 = vlaneseq
    %v1607 = vshrl.u32 %v1606, 7
    %v1608 = vsub.s32 2, %v1607
    %v1609 = vrot.slane %v1571, %v1608
    %v1610 = vadd.f32 %v1604, %v1609
    %v1611 = vadd.f32 %v1605, %v1609
    %v1612 = vpack.c.bf16 %v1611, %v1610
    %s1613 = scalar_lea.vmem %s5, 16
    %v1614 = vld [vmem:[%s1613] sm:$0xf]
    %v1615 = vld [vmem:[%s1613 + $0x4] sm:$0xf]
    %v1616 = vld [vmem:[%s1613 + $0x8] sm:$0xf]
    %v1617 = vld [vmem:[%s1613 + $0xc] sm:$0xf]
    %s1618 = scalar_lea.vmem [#allocation2], 1
    %v1619 = vld [vmem:[%s1618] sm:$0x1]
    %v1621 = vlaneseq
    %v1622 = vshrl.u32 %v1621, 7
    %v1623 = vsub.s32 0, %v1622
    %v1624 = vrot.slane %v1619, %v1623
    %v1630 = vunpack.c.l.b16 %v1614
    %v1631 = vunpack.c.l.b16 %v1615
    %v1632 = vunpack.c.l.b16 %v1616
    %v1633 = vunpack.c.l.b16 %v1617
    %v1634 = vpack.c.b16 %v1631, %v1630
    %v1635 = vpack.c.b16 %v1633, %v1632
    %v1639 = vsel %vm52, %v1612, 0
    %1641 = vmatprep.subr.bf16.mxu0 0
    %1642 = vmatpush1.bf16.msra.mxu0 %v1634
    %1643 = vmatprep.subr.bf16.mxu0 0
    %1644 = vmatpush1.bf16.msra.mxu0 %v1635
    %1645 = vmatprep.subr.bf16.mxu0 0
    %1646 = vmatpush1.bf16.msra.mxu0 0
    %1647 = vmatprep.subr.bf16.mxu0 0
    %1648 = vmatpush1.bf16.msra.mxu0 0
    %1649 = vmatprep.subr.bf16.mxu0 0
    %1650 = vmatpush1.bf16.msra.mxu0 0
    %1651 = vmatprep.subr.bf16.mxu0 0
    %1652 = vmatpush1.bf16.msra.mxu0 0
    %1653 = vmatprep.subr.bf16.mxu0 0
    %1654 = vmatpush1.bf16.msra.mxu0 0
    %1655 = vmatprep.subr.bf16.mxu0 0
    %1656 = vmatpush1.bf16.msra.mxu0 0
    %1657 = vmatprep.subr.bf16.mxu0 0
    %1658 = vmatpush1.bf16.msra.mxu0 0
    %1659 = vmatprep.subr.bf16.mxu0 0
    %1660 = vmatpush1.bf16.msra.mxu0 0
    %1661 = vmatprep.subr.bf16.mxu0 0
    %1662 = vmatpush1.bf16.msra.mxu0 0
    %1663 = vmatprep.subr.bf16.mxu0 0
    %1664 = vmatpush1.bf16.msra.mxu0 0
    %1665 = vmatprep.subr.bf16.mxu0 0
    %1666 = vmatpush1.bf16.msra.mxu0 0
    %1667 = vmatprep.subr.bf16.mxu0 0
    %1668 = vmatpush1.bf16.msra.mxu0 0
    %1669 = vmatprep.subr.bf16.mxu0 0
    %1670 = vmatpush1.bf16.msra.mxu0 0
    %1671 = vmatprep.subr.bf16.mxu0 0
    %1672 = vmatpush1.bf16.msra.mxu0 0
    %1673 = vmatprep.mubr.bf16.mxu0 0
    %1674 = vmatmul.mubr.bf16.gmra.mrb[0].mxu0 %v1639
    %v1675 = vpop.f32.mrb[0].mxu0
    %v1676 = vadd.f32 %v1624, %v1675
    %v1677 = vpop.f32.mrb[0].mxu0
    %v1678 = vpop.f32.mrb[0].mxu0
    %v1679 = vadd.f32 %v1624, %v1678
    %v1680 = vpop.f32.mrb[0].mxu0
    %1681 = vdwg.mxu0
    %v1682 = vmax.f32 %v1676, 0.0
    %v1683 = vmax.f32 %v1679, 0.0
    %v1684 = vpack.c.bf16 %v1683, %v1682
    %s1685 = scalar_lea.vmem %s7, 32
    %v1686 = vld [vmem:[%s1685] sm:$0xf]
    %v1687 = vld [vmem:[%s1685 + $0x4] sm:$0xf]
    %v1688 = vld [vmem:[%s1685 + $0x8] sm:$0xf]
    %v1689 = vld [vmem:[%s1685 + $0xc] sm:$0xf]
    %v1690 = vld [vmem:[%s1685 + $0x10] sm:$0xf]
    %v1691 = vld [vmem:[%s1685 + $0x14] sm:$0xf]
    %v1692 = vld [vmem:[%s1685 + $0x18] sm:$0xf]
    %v1693 = vld [vmem:[%s1685 + $0x1c] sm:$0xf]
    %v1694 = vlaneseq
    %v1695 = vshrl.u32 %v1694, 7
    %v1696 = vsub.s32 0, %v1695
    %v1697 = vrot.slane %v1571, %v1696
    %v1706 = vunpack.c.l.b16 %v1686
    %v1707 = vunpack.c.l.b16 %v1687
    %v1708 = vunpack.c.l.b16 %v1688
    %v1709 = vunpack.c.l.b16 %v1689
    %v1710 = vunpack.c.l.b16 %v1690
    %v1711 = vunpack.c.l.b16 %v1691
    %v1712 = vunpack.c.l.b16 %v1692
    %v1713 = vunpack.c.l.b16 %v1693
    %v1714 = vpack.c.b16 %v1707, %v1706
    %v1715 = vpack.c.b16 %v1709, %v1708
    %v1716 = vpack.c.b16 %v1711, %v1710
    %v1717 = vpack.c.b16 %v1713, %v1712
    %v1723 = vsel %vm870, %v1684, 0
    %1725 = vmatprep.subr.bf16.mxu0 0
    %1726 = vmatpush1.bf16.msra.mxu0 %v1714
    %1727 = vmatprep.subr.bf16.mxu0 0
    %1728 = vmatpush1.bf16.msra.mxu0 %v1715
    %1729 = vmatprep.subr.bf16.mxu0 0
    %1730 = vmatpush1.bf16.msra.mxu0 %v1716
    %1731 = vmatprep.subr.bf16.mxu0 0
    %1732 = vmatpush1.bf16.msra.mxu0 %v1717
    %1733 = vmatprep.subr.bf16.mxu0 0
    %1734 = vmatpush1.bf16.msra.mxu0 0
    %1735 = vmatprep.subr.bf16.mxu0 0
    %1736 = vmatpush1.bf16.msra.mxu0 0
    %1737 = vmatprep.subr.bf16.mxu0 0
    %1738 = vmatpush1.bf16.msra.mxu0 0
    %1739 = vmatprep.subr.bf16.mxu0 0
    %1740 = vmatpush1.bf16.msra.mxu0 0
    %1741 = vmatprep.subr.bf16.mxu0 0
    %1742 = vmatpush1.bf16.msra.mxu0 0
    %1743 = vmatprep.subr.bf16.mxu0 0
    %1744 = vmatpush1.bf16.msra.mxu0 0
    %1745 = vmatprep.subr.bf16.mxu0 0
    %1746 = vmatpush1.bf16.msra.mxu0 0
    %1747 = vmatprep.subr.bf16.mxu0 0
    %1748 = vmatpush1.bf16.msra.mxu0 0
    %1749 = vmatprep.subr.bf16.mxu0 0
    %1750 = vmatpush1.bf16.msra.mxu0 0
    %1751 = vmatprep.subr.bf16.mxu0 0
    %1752 = vmatpush1.bf16.msra.mxu0 0
    %1753 = vmatprep.subr.bf16.mxu0 0
    %1754 = vmatpush1.bf16.msra.mxu0 0
    %1755 = vmatprep.subr.bf16.mxu0 0
    %1756 = vmatpush1.bf16.msra.mxu0 0
    %1757 = vmatprep.mubr.bf16.mxu0 0
    %1758 = vmatmul.mubr.bf16.gmra.mrb[0].mxu0 %v1723
    %v1759 = vpop.f32.mrb[0].mxu0
    %v1760 = vadd.f32 %v1697, %v1759
    %v1761 = vpop.f32.mrb[0].mxu0
    %v1762 = vpop.f32.mrb[0].mxu0
    %v1763 = vadd.f32 %v1697, %v1762
    %v1764 = vpop.f32.mrb[0].mxu0
    %1765 = vdwg.mxu0
    %v1766 = vadd.f32 %v1760, %v1610
    %v1767 = vadd.f32 %v1763, %v1611
    %v1768 = vsel %vm52, %v1766, 0.0
    %1769 = vadd.xlane.f32.xlu0 %v1768
    %v1770 = vpop.xlane.xlu0 %1769
    %v1771 = vsel %vm52, %v1767, 0.0
    %1772 = vadd.xlane.f32.xlu0 %v1771
    %v1773 = vpop.xlane.xlu0 %1772
    %v1774 = vmul.f32 %v1770, %v59
    %v1775 = vmul.f32 %v1773, %v59
    %v1776 = vsub.f32 %v1766, %v1774
    %v1777 = vsub.f32 %v1767, %v1775
    %v1778 = vmul.f32 %v1776, %v1776
    %v1779 = vmul.f32 %v1777, %v1777
    %v1780 = vsel %vm52, %v1778, 0.0
    %1781 = vadd.xlane.f32.xlu0 %v1780
    %v1782 = vpop.xlane.xlu0 %1781
    %v1783 = vsel %vm52, %v1779, 0.0
    %1784 = vadd.xlane.f32.xlu0 %v1783
    %v1785 = vpop.xlane.xlu0 %1784
    %v1786 = vmul.f32 %v1782, %v59
    %v1787 = vmul.f32 %v1785, %v59
    %v1788 = vadd.f32 %v1786, 1e-06
    %v1789 = vadd.f32 %v1787, 1e-06
    %v1790 = vrsqrt.pop %v1788
    %v1791 = vrsqrt.pop %v1789
    %v1792 = vmul.f32 %v1776, %v1790
    %v1793 = vmul.f32 %v1777, %v1791
    %v1794 = vlaneseq
    %v1795 = vshrl.u32 %v1794, 7
    %v1796 = vsub.s32 3, %v1795
    %v1797 = vrot.slane %v1571, %v1796
    %v1798 = vmul.f32 %v1792, %v1797
    %v1799 = vmul.f32 %v1793, %v1797
    %v1800 = vlaneseq
    %v1801 = vshrl.u32 %v1800, 7
    %v1802 = vsub.s32 4, %v1801
    %v1803 = vrot.slane %v1571, %v1802
    %v1804 = vadd.f32 %v1798, %v1803
    %v1805 = vadd.f32 %v1799, %v1803
    %1806 = vst.msk [vmem:[#allocation5] sm:$0xff] %vm52, %v1804
    %1807 = vst.msk [vmem:[#allocation5 + $0x8] sm:$0xff] %vm52, %v1805
    // Predicated region
    $region42: #{tpu_custom_call.1} parent=1 // pred_check
      _
    $region43: #{tpu_custom_call.1} parent=1 // pred_check_branch
      %1809 = sbr.rel (0) target = $region45
    $region44: #{tpu_custom_call.1} parent=1 // pred_region
      %s1811 = ssub.s32 256, 256
      %1812 = vsyncadd [#allocation4], %s1811
      %s1813 = sshll.u32 [#allocation5], 4
      %s1814 = int_to_ptr.vmem [resolvable:$true] %s1813
      %1819 = dma.vmem_to_hbm [thread:$0]  %s1814, 256, %s9, [#allocation4], 128, 128, 8
    $region45: #{tpu_custom_call.1} parent=1 // pred_fallthru
      _
    // Predicated region
    $region46: #{tpu_custom_call.1} parent=1 // pred_check
      _
    $region47: #{tpu_custom_call.1} parent=1 // pred_check_branch
      %1821 = sbr.rel (0) target = $region49
    $region48: #{tpu_custom_call.1} parent=1 // pred_region
      %1822 = dma.done [#allocation4], 256
    $region49: #{tpu_custom_call.1} parent=1 // pred_fallthru
      _
    %1823 = vsyncpa [#allocation3], 1
    %1824 = vsyncpa [#allocation4], 1

</llo_original>
